<compile_context>
chip_gen: v5e
topology: v5e:2x2
jax: 0.10.0
libtpu: 0.0.40
codegen_flags: <defaults>
</compile_context>

<pallas_src>
import jax
import jax.numpy as jnp
from jax import lax
from jax.experimental import pallas as pl
from jax.experimental.pallas import tpu as pltpu

NHEAD = 4          # fixed by the module (nhead=4)
ENC_HIDDEN = 16    # encoder_hidden_size in the module


# ----------------------------------------------------------------------------
# Kernel 1: self.enc MLP + TransformerEncoderLayer, Bt batch elements per step.
# ----------------------------------------------------------------------------
def _enc_transformer_kernel(x_ref, w1_ref, b1_ref, w2_ref, b2_ref,
                            wqkv_ref, bqkv_ref, wo_ref, bo_ref,
                            g1_ref, be1_ref, wff1_ref, bff1_ref,
                            wff2_ref, bff2_ref, g2_ref, be2_ref,
                            out_ref, ctx_ref):
    bt, n, f_in = x_ref.shape
    d = w2_ref.shape[1]
    dh = d // NHEAD

    x = x_ref[...].reshape(bt * n, f_in)

    # ---- self.enc : Linear -> LeakyReLU(0.01) -> Linear (full-width GEMMs) --
    h = jnp.dot(x, w1_ref[...], preferred_element_type=jnp.float32) + b1_ref[...]
    h = jnp.where(h > 0, h, 0.01 * h)
    h = jnp.dot(h, w2_ref[...], preferred_element_type=jnp.float32) + b2_ref[...]

    # ---- Multi-head self-attention ------------------------------------------
    # One fused QKV GEMM (Bt*N, 3D); per-head score/context matmuls (inherently
    # per-head) in a short static loop writing contexts into VMEM scratch at
    # static lane offsets; one fused output GEMM (Bt*N, D) @ (D, D).
    qkv = jnp.dot(h, wqkv_ref[...], preferred_element_type=jnp.float32) + bqkv_ref[...]
    scale = 1.0 / float(dh) ** 0.5
    for hh in range(NHEAD):
        q3 = qkv[:, hh * dh:(hh + 1) * dh].reshape(bt, n, dh)
        k3 = qkv[:, d + hh * dh:d + (hh + 1) * dh].reshape(bt, n, dh)
        v3 = qkv[:, 2 * d + hh * dh:2 * d + (hh + 1) * dh].reshape(bt, n, dh)
        s = jnp.einsum('bqe,bke->bqk', q3, k3,
                       preferred_element_type=jnp.float32) * scale       # (bt,n,n)
        s = s - jnp.max(s, axis=-1, keepdims=True)
        p = jnp.exp(s)
        p = p * pl.reciprocal(jnp.sum(p, axis=-1, keepdims=True), approx=True)
        oh = jnp.einsum('bqk,bke->bqe', p, v3,
                        preferred_element_type=jnp.float32)              # (bt,n,dh)
        ctx_ref[:, hh * dh:(hh + 1) * dh] = oh.reshape(bt * n, dh)
    attn = jnp.dot(ctx_ref[...], wo_ref[...],
                   preferred_element_type=jnp.float32) + bo_ref[...]

    # ---- residual + LayerNorm1 (rsqrt on EUP) --------------------------------
    h = h + attn
    mu = jnp.mean(h, axis=-1, keepdims=True)
    var = jnp.mean((h - mu) ** 2, axis=-1, keepdims=True)
    h = (h - mu) * lax.rsqrt(var + 1e-5) * g1_ref[...] + be1_ref[...]

    # ---- FFN (ReLU) + residual + LayerNorm2 ----------------------------------
    f = jnp.dot(h, wff1_ref[...], preferred_element_type=jnp.float32) + bff1_ref[...]
    f = jnp.maximum(f, 0.0)
    f = jnp.dot(f, wff2_ref[...], preferred_element_type=jnp.float32) + bff2_ref[...]
    h = h + f
    mu = jnp.mean(h, axis=-1, keepdims=True)
    var = jnp.mean((h - mu) ** 2, axis=-1, keepdims=True)
    h = (h - mu) * lax.rsqrt(var + 1e-5) * g2_ref[...] + be2_ref[...]

    out_ref[...] = h.reshape(bt, n, d).astype(out_ref.dtype)


# ----------------------------------------------------------------------------
# Kernel 2: DEC encoder MLP + ClusterAssignment + pooling bmm (stages 2+3 fused,
# Bt batch elements per step; assignment emitted lane-dense as (Bt, K, N)).
# ----------------------------------------------------------------------------
def _dec_cluster_pool_kernel(h_ref, we1_ref, be1_ref, we2_ref, be2_ref,
                             we3_ref, be3_ref, c_ref, icn_ref,
                             repr_ref, assign_ref):
    bt, n, d = h_ref.shape
    k = c_ref.shape[0]

    x = h_ref[...].reshape(bt, n * d)                    # matches torch .view(B, -1)

    # DEC encoder: Linear -> LeakyReLU -> Linear -> LeakyReLU -> Linear
    e = jnp.dot(x, we1_ref[...], preferred_element_type=jnp.float32) + be1_ref[...]
    e = jnp.where(e > 0, e, 0.01 * e)
    e = jnp.dot(e, we2_ref[...], preferred_element_type=jnp.float32) + be2_ref[...]
    e = jnp.where(e > 0, e, 0.01 * e)
    e = jnp.dot(e, we3_ref[...], preferred_element_type=jnp.float32) + be3_ref[...]
    e3 = e.reshape(bt, n, d)                             # (bt, N, D)

    # ClusterAssignment (project_assignment=True): softmax_k((E C^T)^2 / ||c_k||)
    # computed directly in (bt, K, N) layout so the assignment store is lane-dense.
    cb = jnp.broadcast_to(c_ref[...], (bt, k, d))
    a = jnp.einsum('bkd,bnd->bkn', cb, e3, preferred_element_type=jnp.float32)
    a = (a * a) * icn_ref[...]                           # icn: (K, 1) = 1/||c_k||
    a = a - jnp.max(a, axis=1, keepdims=True)            # softmax over clusters (K)
    a = jnp.exp(a)
    a = a * pl.reciprocal(jnp.sum(a, axis=1, keepdims=True), approx=True)

    # node_repr = assignment^T @ encoded   (DEC's bmm)
    r = jnp.einsum('bkn,bnd->bkd', a, e3, preferred_element_type=jnp.float32)
    repr_ref[...] = r.astype(repr_ref.dtype)
    assign_ref[...] = a.astype(assign_ref.dtype)


# ----------------------------------------------------------------------------
# Wrapper
# ----------------------------------------------------------------------------
def _vmem_limit_bytes(streamed_block_bytes, resident_bytes):
    # double-buffered streamed blocks + resident weights/scratch + headroom,
    # capped at v7x's 64 MiB physical VMEM.
    need = 4 * streamed_block_bytes + 2 * resident_bytes + (2 << 20)
    return int(min(max(need, 8 << 20), 64 << 20))


def trans_pooling_encoder_forward(x, params, *, bt=2):
    B, N, F_in = x.shape
    EH = params["w1"].shape[1]
    D = params["w2"].shape[1]
    H = params["wff1"].shape[1]
    K = params["cluster_centers"].shape[0]
    assert B % bt == 0, "batch must be divisible by the per-step batch tile"
    g = B // bt
    f32 = jnp.float32

    def full_spec(a):
        zero = (0,) * a.ndim
        return pl.BlockSpec(a.shape, lambda b, _z=zero: _z)   # resident weight

    # ---------------- stage 1: enc MLP + transformer layer -------------------
    w_args = (params["w1"], params["b1"], params["w2"], params["b2"],
              params["wqkv"], params["bqkv"], params["wo"], params["bo"],
              params["g1"], params["beta1"],
              params["wff1"], params["bff1"], params["wff2"], params["bff2"],
              params["g2"], params["beta2"])
    wbytes1 = sum(int(w.size) * 4 for w in w_args)
    blk_bytes1 = 4 * (bt * N * F_in + bt * N * D)
    flops1 = B * (2 * N * F_in * EH + 2 * N * EH * D + 6 * N * D * D
                  + 4 * N * N * D + 2 * N * D * D + 4 * N * D * H)
    h = pl.pallas_call(
        _enc_transformer_kernel,
        out_shape=jax.ShapeDtypeStruct((B, N, D), f32),
        grid_spec=pltpu.PrefetchScalarGridSpec(
            num_scalar_prefetch=0,
            grid=(g,),
            in_specs=[pl.BlockSpec((bt, N, F_in), lambda b: (b, 0, 0))]
                     + [full_spec(w) for w in w_args],
            out_specs=pl.BlockSpec((bt, N, D), lambda b: (b, 0, 0)),
            scratch_shapes=[pltpu.VMEM((bt * N, D), f32)],   # per-head context slab
        ),
        compiler_params=pltpu.CompilerParams(
            dimension_semantics=("parallel",),
            vmem_limit_bytes=_vmem_limit_bytes(blk_bytes1, wbytes1 + 4 * bt * N * D)),
        cost_estimate=pl.CostEstimate(
            flops=flops1,
            transcendentals=B * (NHEAD * N * N + 4 * N),
            bytes_accessed=4 * int(x.size) + wbytes1 + 4 * B * N * D),
    )(x, *w_args)

    # ---------------- stage 2+3 fused: DEC encoder + cluster + pooling --------
    C = params["cluster_centers"]
    icn = (1.0 / jnp.linalg.norm(C, axis=-1)).reshape(K, 1)   # 1/||c_k|| precomputed
    dec_w = (params["we1"], params["be1"], params["we2"], params["be2"],
             params["we3"], params["be3"])
    wbytes2 = sum(int(w.size) * 4 for w in dec_w) + 4 * (K * D + K)
    blk_bytes2 = 4 * (bt * N * D + bt * K * D + bt * K * N)
    flops2 = B * (2 * (N * D * EH + EH * EH + EH * N * D) + 4 * N * D * K)
    node_repr, assign_t = pl.pallas_call(
        _dec_cluster_pool_kernel,
        out_shape=(jax.ShapeDtypeStruct((B, K, D), f32),
                   jax.ShapeDtypeStruct((B, K, N), f32)),
        grid_spec=pltpu.PrefetchScalarGridSpec(
            num_scalar_prefetch=0,
            grid=(g,),
            in_specs=[pl.BlockSpec((bt, N, D), lambda b: (b, 0, 0))]
                     + [full_spec(w) for w in dec_w]
                     + [full_spec(C), full_spec(icn)],
            out_specs=(pl.BlockSpec((bt, K, D), lambda b: (b, 0, 0)),
                       pl.BlockSpec((bt, K, N), lambda b: (b, 0, 0))),
        ),
        compiler_params=pltpu.CompilerParams(
            dimension_semantics=("parallel",),
            vmem_limit_bytes=_vmem_limit_bytes(blk_bytes2, wbytes2)),
        cost_estimate=pl.CostEstimate(
            flops=flops2,
            transcendentals=B * N * K,
            bytes_accessed=4 * (B * N * D + B * K * D + B * K * N) + wbytes2),
    )(h, *dec_w, C, icn)

    # thin XLA transpose back to the module's (B, N, K) assignment layout
    assignment = jnp.transpose(assign_t, (0, 2, 1))
    return node_repr, assignment


# ----------------------------------------------------------------------------
# Parameter construction (init-time, mirrors the PyTorch module's __init__)
# ----------------------------------------------------------------------------
def init_params(key, input_feature_size, attention_dim, input_node_num,
                hidden_size, output_node_num):
    D, N, K = attention_dim, input_node_num, output_node_num
    keys = iter(jax.random.split(key, 20))

    def linear(fan_in, fan_out):
        bound = 1.0 / (fan_in ** 0.5)
        w = jax.random.uniform(next(keys), (fan_in, fan_out), jnp.float32, -bound, bound)
        b = jax.random.uniform(next(keys), (1, fan_out), jnp.float32, -bound, bound)
        return w, b

    p = {}
    p["w1"], p["b1"] = linear(input_feature_size, ENC_HIDDEN)
    p["w2"], p["b2"] = linear(ENC_HIDDEN, D)

    # MHA: packed QKV weight (D, 3D) = [Q|K|V], head-major dh blocks inside each
    # (same packing as nn.MultiheadAttention's in_proj, transposed for right-mult).
    xb = (6.0 / (D + 3 * D)) ** 0.5
    p["wqkv"] = jax.random.uniform(next(keys), (D, 3 * D), jnp.float32, -xb, xb)
    p["bqkv"] = jnp.zeros((1, 3 * D), jnp.float32)
    wb = 1.0 / (D ** 0.5)
    p["wo"] = jax.random.uniform(next(keys), (D, D), jnp.float32, -wb, wb)
    p["bo"] = jnp.zeros((1, D), jnp.float32)

    p["g1"], p["beta1"] = jnp.ones((1, D), jnp.float32), jnp.zeros((1, D), jnp.float32)
    p["wff1"], p["bff1"] = linear(D, hidden_size)
    p["wff2"], p["bff2"] = linear(hidden_size, D)
    p["g2"], p["beta2"] = jnp.ones((1, D), jnp.float32), jnp.zeros((1, D), jnp.float32)

    p["we1"], p["be1"] = linear(D * N, ENC_HIDDEN)
    p["we2"], p["be2"] = linear(ENC_HIDDEN, ENC_HIDDEN)
    p["we3"], p["be3"] = linear(ENC_HIDDEN, D * N)

    # Cluster centers: Xavier uniform + Gram-Schmidt (ClusterAssignment.__init__).
    cb = (6.0 / (K + D)) ** 0.5
    cc = jax.random.uniform(next(keys), (K, D), jnp.float32, -cb, cb)
    rows = [cc[i] for i in range(K)]
    ortho = [rows[0]]
    for i in range(1, K):
        proj = jnp.zeros((D,), jnp.float32)
        for j in range(i):
            u = rows[j]
            proj = proj + (jnp.dot(u, rows[i]) / jnp.dot(u, u)) * u
        rows[i] = rows[i] - proj
        ortho.append(rows[i] / jnp.linalg.norm(rows[i]))
    p["cluster_centers"] = jnp.stack(ortho, axis=0)
    return p


# ----------------------------------------------------------------------------
# Pure-JAX reference (same math) for correctness checking
# ----------------------------------------------------------------------------
def _reference_forward(x, p):
    hi = lax.Precision.HIGHEST
    leaky = lambda t: jnp.where(t > 0, t, 0.01 * t)

    h = leaky(jnp.dot(x, p["w1"], precision=hi) + p["b1"])
    h = jnp.dot(h, p["w2"], precision=hi) + p["b2"]
    B, N, D = h.shape
    dh = D // NHEAD

    qkv = jnp.dot(h, p["wqkv"], precision=hi) + p["bqkv"]
    q = qkv[..., 0 * D:1 * D].reshape(B, N, NHEAD, dh)
    k = qkv[..., 1 * D:2 * D].reshape(B, N, NHEAD, dh)
    v = qkv[..., 2 * D:3 * D].reshape(B, N, NHEAD, dh)
    s = jnp.einsum("bqhe,bkhe->bhqk", q, k, precision=hi) / float(dh) ** 0.5
    a = jax.nn.softmax(s, axis=-1)
    o = jnp.einsum("bhqk,bkhe->bqhe", a, v, precision=hi).reshape(B, N, D)
    attn = jnp.dot(o, p["wo"], precision=hi) + p["bo"]

    def ln(t, g, b):
        mu = jnp.mean(t, axis=-1, keepdims=True)
        var = jnp.mean((t - mu) ** 2, axis=-1, keepdims=True)
        return (t - mu) / jnp.sqrt(var + 1e-5) * g + b

    h = ln(h + attn, p["g1"], p["beta1"])
    f = jnp.maximum(jnp.dot(h, p["wff1"], precision=hi) + p["bff1"], 0.0)
    f = jnp.dot(f, p["wff2"], precision=hi) + p["bff2"]
    h = ln(h + f, p["g2"], p["beta2"])

    xf = h.reshape(B, N * D)
    e = leaky(jnp.dot(xf, p["we1"], precision=hi) + p["be1"])
    e = leaky(jnp.dot(e, p["we2"], precision=hi) + p["be2"])
    e = (jnp.dot(e, p["we3"], precision=hi) + p["be3"]).reshape(B, N, D)

    C = p["cluster_centers"]
    a2 = jnp.einsum("bnd,kd->bnk", e, C, precision=hi) ** 2
    a2 = a2 / jnp.linalg.norm(C, axis=-1)[None, None, :]
    assign = jax.nn.softmax(a2, axis=-1)
    node_repr = jnp.einsum("bnk,bnd->bkd", assign, e, precision=hi)
    return node_repr, assign


if __name__ == "__main__":
    key = jax.random.PRNGKey(0)
    k_par, k_x = jax.random.split(key)

    B = 8                    # batch
    INPUT_NODE_NUM = 16      # N (brain nodes / sequence length)
    INPUT_FEATURE_SIZE = 8   # per-node input feature size
    ATTENTION_DIM = 16       # d_model (divisible by nhead=4)
    HIDDEN_SIZE = 32         # transformer FFN dim
    OUTPUT_NODE_NUM = 8      # clusters / pooled node count
    BT = 2                   # batch elements per grid step -> grid=(4,), parallel

    params = init_params(k_par, INPUT_FEATURE_SIZE, ATTENTION_DIM,
                         INPUT_NODE_NUM, HIDDEN_SIZE, OUTPUT_NODE_NUM)
    x = jax.random.normal(k_x, (B, INPUT_NODE_NUM, INPUT_FEATURE_SIZE), jnp.float32)

    node_repr, assignment = trans_pooling_encoder_forward(x, params, bt=BT)
    node_repr = jax.block_until_ready(node_repr)
    assignment = jax.block_until_ready(assignment)

    assert node_repr.shape == (B, OUTPUT_NODE_NUM, ATTENTION_DIM)
    assert assignment.shape == (B, INPUT_NODE_NUM, OUTPUT_NODE_NUM)
    assert bool(jnp.allclose(jnp.sum(assignment, axis=-1), 1.0, atol=5e-3))

    ref_repr, ref_assign = _reference_forward(x, params)
    assert bool(jnp.allclose(node_repr, ref_repr, rtol=5e-3, atol=5e-3))
    assert bool(jnp.allclose(assignment, ref_assign, rtol=5e-3, atol=5e-3))

    print("KERNEL_OK")
</pallas_src>

<mosaic_0001>
module attributes {stable_mosaic.version = 11 : i64} {
  func.func @_enc_transformer_kernel(%arg0: i32, %arg1: memref<2x16x8xf32, #tpu.memory_space<vmem>>, %arg2: memref<8x16xf32, #tpu.memory_space<vmem>>, %arg3: memref<1x16xf32, #tpu.memory_space<vmem>>, %arg4: memref<16x16xf32, #tpu.memory_space<vmem>>, %arg5: memref<1x16xf32, #tpu.memory_space<vmem>>, %arg6: memref<16x48xf32, #tpu.memory_space<vmem>>, %arg7: memref<1x48xf32, #tpu.memory_space<vmem>>, %arg8: memref<16x16xf32, #tpu.memory_space<vmem>>, %arg9: memref<1x16xf32, #tpu.memory_space<vmem>>, %arg10: memref<1x16xf32, #tpu.memory_space<vmem>>, %arg11: memref<1x16xf32, #tpu.memory_space<vmem>>, %arg12: memref<16x32xf32, #tpu.memory_space<vmem>>, %arg13: memref<1x32xf32, #tpu.memory_space<vmem>>, %arg14: memref<32x16xf32, #tpu.memory_space<vmem>>, %arg15: memref<1x16xf32, #tpu.memory_space<vmem>>, %arg16: memref<1x16xf32, #tpu.memory_space<vmem>>, %arg17: memref<1x16xf32, #tpu.memory_space<vmem>>, %arg18: memref<2x16x16xf32, #tpu.memory_space<vmem>>, %arg19: memref<32x16xf32, #tpu.memory_space<vmem>>) attributes {dimension_semantics = [#tpu.dimension_semantics<parallel>], iteration_bounds = array<i64: 4>, scalar_prefetch = 0 : i64, scratch_operands = 1 : i64, tpu.core_type = #tpu.core_type<tc>, window_params = [{transform_indices = @transform_0, window_bounds = array<i64: 2, 16, 8>}, {pipeline_mode = #tpu.pipeline_mode<synchronous>, transform_indices = @transform_1, window_bounds = array<i64: 8, 16>}, {pipeline_mode = #tpu.pipeline_mode<synchronous>, transform_indices = @transform_2, window_bounds = array<i64: 1, 16>}, {pipeline_mode = #tpu.pipeline_mode<synchronous>, transform_indices = @transform_3, window_bounds = array<i64: 16, 16>}, {pipeline_mode = #tpu.pipeline_mode<synchronous>, transform_indices = @transform_4, window_bounds = array<i64: 1, 16>}, {pipeline_mode = #tpu.pipeline_mode<synchronous>, transform_indices = @transform_5, window_bounds = array<i64: 16, 48>}, {pipeline_mode = #tpu.pipeline_mode<synchronous>, transform_indices = @transform_6, window_bounds = array<i64: 1, 48>}, {pipeline_mode = #tpu.pipeline_mode<synchronous>, transform_indices = @transform_7, window_bounds = array<i64: 16, 16>}, {pipeline_mode = #tpu.pipeline_mode<synchronous>, transform_indices = @transform_8, window_bounds = array<i64: 1, 16>}, {pipeline_mode = #tpu.pipeline_mode<synchronous>, transform_indices = @transform_9, window_bounds = array<i64: 1, 16>}, {pipeline_mode = #tpu.pipeline_mode<synchronous>, transform_indices = @transform_10, window_bounds = array<i64: 1, 16>}, {pipeline_mode = #tpu.pipeline_mode<synchronous>, transform_indices = @transform_11, window_bounds = array<i64: 16, 32>}, {pipeline_mode = #tpu.pipeline_mode<synchronous>, transform_indices = @transform_12, window_bounds = array<i64: 1, 32>}, {pipeline_mode = #tpu.pipeline_mode<synchronous>, transform_indices = @transform_13, window_bounds = array<i64: 32, 16>}, {pipeline_mode = #tpu.pipeline_mode<synchronous>, transform_indices = @transform_14, window_bounds = array<i64: 1, 16>}, {pipeline_mode = #tpu.pipeline_mode<synchronous>, transform_indices = @transform_15, window_bounds = array<i64: 1, 16>}, {pipeline_mode = #tpu.pipeline_mode<synchronous>, transform_indices = @transform_16, window_bounds = array<i64: 1, 16>}, {transform_indices = @transform_17, window_bounds = array<i64: 2, 16, 16>}]} {
    %c0 = arith.constant 0 : index
    %c0_0 = arith.constant 0 : index
    %c0_1 = arith.constant 0 : index
    %0 = vector.load %arg1[%c0, %c0_0, %c0_1] : memref<2x16x8xf32, #tpu.memory_space<vmem>>, vector<2x16x8xf32>
    %1 = vector.shape_cast %0 : vector<2x16x8xf32> to vector<32x8xf32>
    %c0_2 = arith.constant 0 : index
    %c0_3 = arith.constant 0 : index
    %2 = vector.load %arg2[%c0_2, %c0_3] : memref<8x16xf32, #tpu.memory_space<vmem>>, vector<8x16xf32>
    %cst = arith.constant dense<0.000000e+00> : vector<32x16xf32>
    %3 = tpu.matmul %1, %2, %cst {dimension_numbers = #tpu.dot_dimension_numbers<[1], [0], [0], [1], [0, 0, 1, 1], [], []>} : vector<32x8xf32>, vector<8x16xf32>, vector<32x16xf32> -> vector<32x16xf32>
    %c0_4 = arith.constant 0 : index
    %c0_5 = arith.constant 0 : index
    %4 = vector.load %arg3[%c0_4, %c0_5] : memref<1x16xf32, #tpu.memory_space<vmem>>, vector<1x16xf32>
    %5 = vector.broadcast %4 : vector<1x16xf32> to vector<32x16xf32>
    %6 = arith.addf %3, %5 : vector<32x16xf32>
    %cst_6 = arith.constant 0.000000e+00 : f32
    %7 = vector.broadcast %cst_6 : f32 to vector<32x16xf32>
    %8 = arith.cmpf ogt, %6, %7 : vector<32x16xf32>
    %cst_7 = arith.constant 0.00999999977 : f32
    %9 = vector.broadcast %cst_7 : f32 to vector<32x16xf32>
    %10 = arith.mulf %9, %6 : vector<32x16xf32>
    %11 = arith.select %8, %6, %10 : vector<32x16xi1>, vector<32x16xf32>
    %c0_8 = arith.constant 0 : index
    %c0_9 = arith.constant 0 : index
    %12 = vector.load %arg4[%c0_8, %c0_9] : memref<16x16xf32, #tpu.memory_space<vmem>>, vector<16x16xf32>
    %cst_10 = arith.constant dense<0.000000e+00> : vector<32x16xf32>
    %13 = tpu.matmul %11, %12, %cst_10 {dimension_numbers = #tpu.dot_dimension_numbers<[1], [0], [0], [1], [0, 0, 1, 1], [], []>} : vector<32x16xf32>, vector<16x16xf32>, vector<32x16xf32> -> vector<32x16xf32>
    %c0_11 = arith.constant 0 : index
    %c0_12 = arith.constant 0 : index
    %14 = vector.load %arg5[%c0_11, %c0_12] : memref<1x16xf32, #tpu.memory_space<vmem>>, vector<1x16xf32>
    %15 = vector.broadcast %14 : vector<1x16xf32> to vector<32x16xf32>
    %16 = arith.addf %13, %15 : vector<32x16xf32>
    %c0_13 = arith.constant 0 : index
    %c0_14 = arith.constant 0 : index
    %17 = vector.load %arg6[%c0_13, %c0_14] : memref<16x48xf32, #tpu.memory_space<vmem>>, vector<16x48xf32>
    %cst_15 = arith.constant dense<0.000000e+00> : vector<32x48xf32>
    %18 = tpu.matmul %16, %17, %cst_15 {dimension_numbers = #tpu.dot_dimension_numbers<[1], [0], [0], [1], [0, 0, 1, 1], [], []>} : vector<32x16xf32>, vector<16x48xf32>, vector<32x48xf32> -> vector<32x48xf32>
    %c0_16 = arith.constant 0 : index
    %c0_17 = arith.constant 0 : index
    %19 = vector.load %arg7[%c0_16, %c0_17] : memref<1x48xf32, #tpu.memory_space<vmem>>, vector<1x48xf32>
    %20 = vector.broadcast %19 : vector<1x48xf32> to vector<32x48xf32>
    %21 = arith.addf %18, %20 : vector<32x48xf32>
    %22 = vector.extract_strided_slice %21 {offsets = [0, 0], sizes = [32, 4], strides = [1, 1]} : vector<32x48xf32> to vector<32x4xf32>
    %23 = vector.shape_cast %22 : vector<32x4xf32> to vector<2x16x4xf32>
    %24 = vector.extract_strided_slice %21 {offsets = [0, 16], sizes = [32, 4], strides = [1, 1]} : vector<32x48xf32> to vector<32x4xf32>
    %25 = vector.shape_cast %24 : vector<32x4xf32> to vector<2x16x4xf32>
    %26 = vector.extract_strided_slice %21 {offsets = [0, 32], sizes = [32, 4], strides = [1, 1]} : vector<32x48xf32> to vector<32x4xf32>
    %27 = vector.shape_cast %26 : vector<32x4xf32> to vector<2x16x4xf32>
    "tpu.trace_start"() <{level = 10 : i32, message = "bqe,bke->bqk"}> : () -> ()
    %cst_18 = arith.constant dense<0.000000e+00> : vector<2x16x16xf32>
    %28 = tpu.matmul %23, %25, %cst_18 {dimension_numbers = #tpu.dot_dimension_numbers<[2], [2], [1], [1], [0, 0, 0, 1, 1, 1], [0], [0]>} : vector<2x16x4xf32>, vector<2x16x4xf32>, vector<2x16x16xf32> -> vector<2x16x16xf32>
    "tpu.trace_stop"() : () -> ()
    %cst_19 = arith.constant 5.000000e-01 : f32
    %29 = vector.broadcast %cst_19 : f32 to vector<2x16x16xf32>
    %30 = arith.mulf %28, %29 : vector<2x16x16xf32>
    %cst_20 = arith.constant dense<0xFF800000> : vector<2x16xf32>
    %31 = vector.multi_reduction <maximumf>, %30, %cst_20 [2] : vector<2x16x16xf32> to vector<2x16xf32>
    %32 = vector.shape_cast %31 : vector<2x16xf32> to vector<2x16x1xf32>
    %33 = vector.broadcast %32 : vector<2x16x1xf32> to vector<2x16x16xf32>
    %34 = arith.subf %30, %33 : vector<2x16x16xf32>
    %35 = math.exp %34 : vector<2x16x16xf32>
    %cst_21 = arith.constant dense<0.000000e+00> : vector<2x16xf32>
    %36 = vector.multi_reduction <add>, %35, %cst_21 [2] : vector<2x16x16xf32> to vector<2x16xf32>
    %37 = vector.shape_cast %36 : vector<2x16xf32> to vector<2x16x1xf32>
    %38 = tpu.reciprocal %37 {approx = true} : vector<2x16x1xf32> -> vector<2x16x1xf32>
    %39 = vector.broadcast %38 : vector<2x16x1xf32> to vector<2x16x16xf32>
    %40 = arith.mulf %35, %39 : vector<2x16x16xf32>
    "tpu.trace_start"() <{level = 10 : i32, message = "bqk,bke->bqe"}> : () -> ()
    %cst_22 = arith.constant dense<0.000000e+00> : vector<2x16x4xf32>
    %41 = tpu.matmul %40, %27, %cst_22 {dimension_numbers = #tpu.dot_dimension_numbers<[2], [1], [1], [2], [0, 0, 0, 1, 1, 2], [0], [0]>} : vector<2x16x16xf32>, vector<2x16x4xf32>, vector<2x16x4xf32> -> vector<2x16x4xf32>
    "tpu.trace_stop"() : () -> ()
    %42 = vector.shape_cast %41 : vector<2x16x4xf32> to vector<32x4xf32>
    %c0_23 = arith.constant 0 : index
    %c0_24 = arith.constant 0 : index
    %43 = vector.load %arg19[%c0_23, %c0_24] : memref<32x16xf32, #tpu.memory_space<vmem>>, vector<32x4xf32>
    tpu.vector_store %arg19[%c0_23, %c0_24], %42 {strides = array<i32>} : memref<32x16xf32, #tpu.memory_space<vmem>>, vector<32x4xf32>,
    %44 = vector.extract_strided_slice %21 {offsets = [0, 4], sizes = [32, 4], strides = [1, 1]} : vector<32x48xf32> to vector<32x4xf32>
    %45 = vector.shape_cast %44 : vector<32x4xf32> to vector<2x16x4xf32>
    %46 = vector.extract_strided_slice %21 {offsets = [0, 20], sizes = [32, 4], strides = [1, 1]} : vector<32x48xf32> to vector<32x4xf32>
    %47 = vector.shape_cast %46 : vector<32x4xf32> to vector<2x16x4xf32>
    %48 = vector.extract_strided_slice %21 {offsets = [0, 36], sizes = [32, 4], strides = [1, 1]} : vector<32x48xf32> to vector<32x4xf32>
    %49 = vector.shape_cast %48 : vector<32x4xf32> to vector<2x16x4xf32>
    "tpu.trace_start"() <{level = 10 : i32, message = "bqe,bke->bqk"}> : () -> ()
    %cst_25 = arith.constant dense<0.000000e+00> : vector<2x16x16xf32>
    %50 = tpu.matmul %45, %47, %cst_25 {dimension_numbers = #tpu.dot_dimension_numbers<[2], [2], [1], [1], [0, 0, 0, 1, 1, 1], [0], [0]>} : vector<2x16x4xf32>, vector<2x16x4xf32>, vector<2x16x16xf32> -> vector<2x16x16xf32>
    "tpu.trace_stop"() : () -> ()
    %cst_26 = arith.constant 5.000000e-01 : f32
    %51 = vector.broadcast %cst_26 : f32 to vector<2x16x16xf32>
    %52 = arith.mulf %50, %51 : vector<2x16x16xf32>
    %cst_27 = arith.constant dense<0xFF800000> : vector<2x16xf32>
    %53 = vector.multi_reduction <maximumf>, %52, %cst_27 [2] : vector<2x16x16xf32> to vector<2x16xf32>
    %54 = vector.shape_cast %53 : vector<2x16xf32> to vector<2x16x1xf32>
    %55 = vector.broadcast %54 : vector<2x16x1xf32> to vector<2x16x16xf32>
    %56 = arith.subf %52, %55 : vector<2x16x16xf32>
    %57 = math.exp %56 : vector<2x16x16xf32>
    %cst_28 = arith.constant dense<0.000000e+00> : vector<2x16xf32>
    %58 = vector.multi_reduction <add>, %57, %cst_28 [2] : vector<2x16x16xf32> to vector<2x16xf32>
    %59 = vector.shape_cast %58 : vector<2x16xf32> to vector<2x16x1xf32>
    %60 = tpu.reciprocal %59 {approx = true} : vector<2x16x1xf32> -> vector<2x16x1xf32>
    %61 = vector.broadcast %60 : vector<2x16x1xf32> to vector<2x16x16xf32>
    %62 = arith.mulf %57, %61 : vector<2x16x16xf32>
    "tpu.trace_start"() <{level = 10 : i32, message = "bqk,bke->bqe"}> : () -> ()
    %cst_29 = arith.constant dense<0.000000e+00> : vector<2x16x4xf32>
    %63 = tpu.matmul %62, %49, %cst_29 {dimension_numbers = #tpu.dot_dimension_numbers<[2], [1], [1], [2], [0, 0, 0, 1, 1, 2], [0], [0]>} : vector<2x16x16xf32>, vector<2x16x4xf32>, vector<2x16x4xf32> -> vector<2x16x4xf32>
    "tpu.trace_stop"() : () -> ()
    %64 = vector.shape_cast %63 : vector<2x16x4xf32> to vector<32x4xf32>
    %c0_30 = arith.constant 0 : index
    %c4 = arith.constant 4 : index
    %65 = vector.load %arg19[%c0_30, %c4] : memref<32x16xf32, #tpu.memory_space<vmem>>, vector<32x4xf32>
    tpu.vector_store %arg19[%c0_30, %c4], %64 {strides = array<i32>} : memref<32x16xf32, #tpu.memory_space<vmem>>, vector<32x4xf32>,
    %66 = vector.extract_strided_slice %21 {offsets = [0, 8], sizes = [32, 4], strides = [1, 1]} : vector<32x48xf32> to vector<32x4xf32>
    %67 = vector.shape_cast %66 : vector<32x4xf32> to vector<2x16x4xf32>
    %68 = vector.extract_strided_slice %21 {offsets = [0, 24], sizes = [32, 4], strides = [1, 1]} : vector<32x48xf32> to vector<32x4xf32>
    %69 = vector.shape_cast %68 : vector<32x4xf32> to vector<2x16x4xf32>
    %70 = vector.extract_strided_slice %21 {offsets = [0, 40], sizes = [32, 4], strides = [1, 1]} : vector<32x48xf32> to vector<32x4xf32>
    %71 = vector.shape_cast %70 : vector<32x4xf32> to vector<2x16x4xf32>
    "tpu.trace_start"() <{level = 10 : i32, message = "bqe,bke->bqk"}> : () -> ()
    %cst_31 = arith.constant dense<0.000000e+00> : vector<2x16x16xf32>
    %72 = tpu.matmul %67, %69, %cst_31 {dimension_numbers = #tpu.dot_dimension_numbers<[2], [2], [1], [1], [0, 0, 0, 1, 1, 1], [0], [0]>} : vector<2x16x4xf32>, vector<2x16x4xf32>, vector<2x16x16xf32> -> vector<2x16x16xf32>
    "tpu.trace_stop"() : () -> ()
    %cst_32 = arith.constant 5.000000e-01 : f32
    %73 = vector.broadcast %cst_32 : f32 to vector<2x16x16xf32>
    %74 = arith.mulf %72, %73 : vector<2x16x16xf32>
    %cst_33 = arith.constant dense<0xFF800000> : vector<2x16xf32>
    %75 = vector.multi_reduction <maximumf>, %74, %cst_33 [2] : vector<2x16x16xf32> to vector<2x16xf32>
    %76 = vector.shape_cast %75 : vector<2x16xf32> to vector<2x16x1xf32>
    %77 = vector.broadcast %76 : vector<2x16x1xf32> to vector<2x16x16xf32>
    %78 = arith.subf %74, %77 : vector<2x16x16xf32>
    %79 = math.exp %78 : vector<2x16x16xf32>
    %cst_34 = arith.constant dense<0.000000e+00> : vector<2x16xf32>
    %80 = vector.multi_reduction <add>, %79, %cst_34 [2] : vector<2x16x16xf32> to vector<2x16xf32>
    %81 = vector.shape_cast %80 : vector<2x16xf32> to vector<2x16x1xf32>
    %82 = tpu.reciprocal %81 {approx = true} : vector<2x16x1xf32> -> vector<2x16x1xf32>
    %83 = vector.broadcast %82 : vector<2x16x1xf32> to vector<2x16x16xf32>
    %84 = arith.mulf %79, %83 : vector<2x16x16xf32>
    "tpu.trace_start"() <{level = 10 : i32, message = "bqk,bke->bqe"}> : () -> ()
    %cst_35 = arith.constant dense<0.000000e+00> : vector<2x16x4xf32>
    %85 = tpu.matmul %84, %71, %cst_35 {dimension_numbers = #tpu.dot_dimension_numbers<[2], [1], [1], [2], [0, 0, 0, 1, 1, 2], [0], [0]>} : vector<2x16x16xf32>, vector<2x16x4xf32>, vector<2x16x4xf32> -> vector<2x16x4xf32>
    "tpu.trace_stop"() : () -> ()
    %86 = vector.shape_cast %85 : vector<2x16x4xf32> to vector<32x4xf32>
    %c0_36 = arith.constant 0 : index
    %c8 = arith.constant 8 : index
    %87 = vector.load %arg19[%c0_36, %c8] : memref<32x16xf32, #tpu.memory_space<vmem>>, vector<32x4xf32>
    tpu.vector_store %arg19[%c0_36, %c8], %86 {strides = array<i32>} : memref<32x16xf32, #tpu.memory_space<vmem>>, vector<32x4xf32>,
    %88 = vector.extract_strided_slice %21 {offsets = [0, 12], sizes = [32, 4], strides = [1, 1]} : vector<32x48xf32> to vector<32x4xf32>
    %89 = vector.shape_cast %88 : vector<32x4xf32> to vector<2x16x4xf32>
    %90 = vector.extract_strided_slice %21 {offsets = [0, 28], sizes = [32, 4], strides = [1, 1]} : vector<32x48xf32> to vector<32x4xf32>
    %91 = vector.shape_cast %90 : vector<32x4xf32> to vector<2x16x4xf32>
    %92 = vector.extract_strided_slice %21 {offsets = [0, 44], sizes = [32, 4], strides = [1, 1]} : vector<32x48xf32> to vector<32x4xf32>
    %93 = vector.shape_cast %92 : vector<32x4xf32> to vector<2x16x4xf32>
    "tpu.trace_start"() <{level = 10 : i32, message = "bqe,bke->bqk"}> : () -> ()
    %cst_37 = arith.constant dense<0.000000e+00> : vector<2x16x16xf32>
    %94 = tpu.matmul %89, %91, %cst_37 {dimension_numbers = #tpu.dot_dimension_numbers<[2], [2], [1], [1], [0, 0, 0, 1, 1, 1], [0], [0]>} : vector<2x16x4xf32>, vector<2x16x4xf32>, vector<2x16x16xf32> -> vector<2x16x16xf32>
    "tpu.trace_stop"() : () -> ()
    %cst_38 = arith.constant 5.000000e-01 : f32
    %95 = vector.broadcast %cst_38 : f32 to vector<2x16x16xf32>
    %96 = arith.mulf %94, %95 : vector<2x16x16xf32>
    %cst_39 = arith.constant dense<0xFF800000> : vector<2x16xf32>
    %97 = vector.multi_reduction <maximumf>, %96, %cst_39 [2] : vector<2x16x16xf32> to vector<2x16xf32>
    %98 = vector.shape_cast %97 : vector<2x16xf32> to vector<2x16x1xf32>
    %99 = vector.broadcast %98 : vector<2x16x1xf32> to vector<2x16x16xf32>
    %100 = arith.subf %96, %99 : vector<2x16x16xf32>
    %101 = math.exp %100 : vector<2x16x16xf32>
    %cst_40 = arith.constant dense<0.000000e+00> : vector<2x16xf32>
    %102 = vector.multi_reduction <add>, %101, %cst_40 [2] : vector<2x16x16xf32> to vector<2x16xf32>
    %103 = vector.shape_cast %102 : vector<2x16xf32> to vector<2x16x1xf32>
    %104 = tpu.reciprocal %103 {approx = true} : vector<2x16x1xf32> -> vector<2x16x1xf32>
    %105 = vector.broadcast %104 : vector<2x16x1xf32> to vector<2x16x16xf32>
    %106 = arith.mulf %101, %105 : vector<2x16x16xf32>
    "tpu.trace_start"() <{level = 10 : i32, message = "bqk,bke->bqe"}> : () -> ()
    %cst_41 = arith.constant dense<0.000000e+00> : vector<2x16x4xf32>
    %107 = tpu.matmul %106, %93, %cst_41 {dimension_numbers = #tpu.dot_dimension_numbers<[2], [1], [1], [2], [0, 0, 0, 1, 1, 2], [0], [0]>} : vector<2x16x16xf32>, vector<2x16x4xf32>, vector<2x16x4xf32> -> vector<2x16x4xf32>
    "tpu.trace_stop"() : () -> ()
    %108 = vector.shape_cast %107 : vector<2x16x4xf32> to vector<32x4xf32>
    %c0_42 = arith.constant 0 : index
    %c12 = arith.constant 12 : index
    %109 = vector.load %arg19[%c0_42, %c12] : memref<32x16xf32, #tpu.memory_space<vmem>>, vector<32x4xf32>
    tpu.vector_store %arg19[%c0_42, %c12], %108 {strides = array<i32>} : memref<32x16xf32, #tpu.memory_space<vmem>>, vector<32x4xf32>,
    %c0_43 = arith.constant 0 : index
    %c0_44 = arith.constant 0 : index
    %110 = vector.load %arg19[%c0_43, %c0_44] : memref<32x16xf32, #tpu.memory_space<vmem>>, vector<32x16xf32>
    %c0_45 = arith.constant 0 : index
    %c0_46 = arith.constant 0 : index
    %111 = vector.load %arg8[%c0_45, %c0_46] : memref<16x16xf32, #tpu.memory_space<vmem>>, vector<16x16xf32>
    %cst_47 = arith.constant dense<0.000000e+00> : vector<32x16xf32>
    %112 = tpu.matmul %110, %111, %cst_47 {dimension_numbers = #tpu.dot_dimension_numbers<[1], [0], [0], [1], [0, 0, 1, 1], [], []>} : vector<32x16xf32>, vector<16x16xf32>, vector<32x16xf32> -> vector<32x16xf32>
    %c0_48 = arith.constant 0 : index
    %c0_49 = arith.constant 0 : index
    %113 = vector.load %arg9[%c0_48, %c0_49] : memref<1x16xf32, #tpu.memory_space<vmem>>, vector<1x16xf32>
    %114 = vector.broadcast %113 : vector<1x16xf32> to vector<32x16xf32>
    %115 = arith.addf %112, %114 : vector<32x16xf32>
    %116 = arith.addf %16, %115 : vector<32x16xf32>
    %cst_50 = arith.constant dense<0.000000e+00> : vector<32xf32>
    %117 = vector.multi_reduction <add>, %116, %cst_50 [1] : vector<32x16xf32> to vector<32xf32>
    %118 = vector.shape_cast %117 : vector<32xf32> to vector<32x1xf32>
    %cst_51 = arith.constant 1.600000e+01 : f32
    %119 = vector.broadcast %cst_51 : f32 to vector<32x1xf32>
    %120 = arith.divf %118, %119 : vector<32x1xf32>
    %121 = vector.broadcast %120 : vector<32x1xf32> to vector<32x16xf32>
    %122 = arith.subf %116, %121 : vector<32x16xf32>
    %123 = arith.mulf %122, %122 : vector<32x16xf32>
    %cst_52 = arith.constant dense<0.000000e+00> : vector<32xf32>
    %124 = vector.multi_reduction <add>, %123, %cst_52 [1] : vector<32x16xf32> to vector<32xf32>
    %125 = vector.shape_cast %124 : vector<32xf32> to vector<32x1xf32>
    %cst_53 = arith.constant 1.600000e+01 : f32
    %126 = vector.broadcast %cst_53 : f32 to vector<32x1xf32>
    %127 = arith.divf %125, %126 : vector<32x1xf32>
    %128 = vector.broadcast %120 : vector<32x1xf32> to vector<32x16xf32>
    %129 = arith.subf %116, %128 : vector<32x16xf32>
    %cst_54 = arith.constant 9.99999974E-6 : f32
    %130 = vector.broadcast %cst_54 : f32 to vector<32x1xf32>
    %131 = arith.addf %127, %130 : vector<32x1xf32>
    %132 = math.rsqrt %131 : vector<32x1xf32>
    %133 = vector.broadcast %132 : vector<32x1xf32> to vector<32x16xf32>
    %134 = arith.mulf %129, %133 : vector<32x16xf32>
    %c0_55 = arith.constant 0 : index
    %c0_56 = arith.constant 0 : index
    %135 = vector.load %arg10[%c0_55, %c0_56] : memref<1x16xf32, #tpu.memory_space<vmem>>, vector<1x16xf32>
    %136 = vector.broadcast %135 : vector<1x16xf32> to vector<32x16xf32>
    %137 = arith.mulf %134, %136 : vector<32x16xf32>
    %c0_57 = arith.constant 0 : index
    %c0_58 = arith.constant 0 : index
    %138 = vector.load %arg11[%c0_57, %c0_58] : memref<1x16xf32, #tpu.memory_space<vmem>>, vector<1x16xf32>
    %139 = vector.broadcast %138 : vector<1x16xf32> to vector<32x16xf32>
    %140 = arith.addf %137, %139 : vector<32x16xf32>
    %c0_59 = arith.constant 0 : index
    %c0_60 = arith.constant 0 : index
    %141 = vector.load %arg12[%c0_59, %c0_60] : memref<16x32xf32, #tpu.memory_space<vmem>>, vector<16x32xf32>
    %cst_61 = arith.constant dense<0.000000e+00> : vector<32x32xf32>
    %142 = tpu.matmul %140, %141, %cst_61 {dimension_numbers = #tpu.dot_dimension_numbers<[1], [0], [0], [1], [0, 0, 1, 1], [], []>} : vector<32x16xf32>, vector<16x32xf32>, vector<32x32xf32> -> vector<32x32xf32>
    %c0_62 = arith.constant 0 : index
    %c0_63 = arith.constant 0 : index
    %143 = vector.load %arg13[%c0_62, %c0_63] : memref<1x32xf32, #tpu.memory_space<vmem>>, vector<1x32xf32>
    %144 = vector.broadcast %143 : vector<1x32xf32> to vector<32x32xf32>
    %145 = arith.addf %142, %144 : vector<32x32xf32>
    %cst_64 = arith.constant 0.000000e+00 : f32
    %146 = vector.broadcast %cst_64 : f32 to vector<32x32xf32>
    %147 = arith.maximumf %145, %146 : vector<32x32xf32>
    %c0_65 = arith.constant 0 : index
    %c0_66 = arith.constant 0 : index
    %148 = vector.load %arg14[%c0_65, %c0_66] : memref<32x16xf32, #tpu.memory_space<vmem>>, vector<32x16xf32>
    %cst_67 = arith.constant dense<0.000000e+00> : vector<32x16xf32>
    %149 = tpu.matmul %147, %148, %cst_67 {dimension_numbers = #tpu.dot_dimension_numbers<[1], [0], [0], [1], [0, 0, 1, 1], [], []>} : vector<32x32xf32>, vector<32x16xf32>, vector<32x16xf32> -> vector<32x16xf32>
    %c0_68 = arith.constant 0 : index
    %c0_69 = arith.constant 0 : index
    %150 = vector.load %arg15[%c0_68, %c0_69] : memref<1x16xf32, #tpu.memory_space<vmem>>, vector<1x16xf32>
    %151 = vector.broadcast %150 : vector<1x16xf32> to vector<32x16xf32>
    %152 = arith.addf %149, %151 : vector<32x16xf32>
    %153 = arith.addf %140, %152 : vector<32x16xf32>
    %cst_70 = arith.constant dense<0.000000e+00> : vector<32xf32>
    %154 = vector.multi_reduction <add>, %153, %cst_70 [1] : vector<32x16xf32> to vector<32xf32>
    %155 = vector.shape_cast %154 : vector<32xf32> to vector<32x1xf32>
    %cst_71 = arith.constant 1.600000e+01 : f32
    %156 = vector.broadcast %cst_71 : f32 to vector<32x1xf32>
    %157 = arith.divf %155, %156 : vector<32x1xf32>
    %158 = vector.broadcast %157 : vector<32x1xf32> to vector<32x16xf32>
    %159 = arith.subf %153, %158 : vector<32x16xf32>
    %160 = arith.mulf %159, %159 : vector<32x16xf32>
    %cst_72 = arith.constant dense<0.000000e+00> : vector<32xf32>
    %161 = vector.multi_reduction <add>, %160, %cst_72 [1] : vector<32x16xf32> to vector<32xf32>
    %162 = vector.shape_cast %161 : vector<32xf32> to vector<32x1xf32>
    %cst_73 = arith.constant 1.600000e+01 : f32
    %163 = vector.broadcast %cst_73 : f32 to vector<32x1xf32>
    %164 = arith.divf %162, %163 : vector<32x1xf32>
    %165 = vector.broadcast %157 : vector<32x1xf32> to vector<32x16xf32>
    %166 = arith.subf %153, %165 : vector<32x16xf32>
    %cst_74 = arith.constant 9.99999974E-6 : f32
    %167 = vector.broadcast %cst_74 : f32 to vector<32x1xf32>
    %168 = arith.addf %164, %167 : vector<32x1xf32>
    %169 = math.rsqrt %168 : vector<32x1xf32>
    %170 = vector.broadcast %169 : vector<32x1xf32> to vector<32x16xf32>
    %171 = arith.mulf %166, %170 : vector<32x16xf32>
    %c0_75 = arith.constant 0 : index
    %c0_76 = arith.constant 0 : index
    %172 = vector.load %arg16[%c0_75, %c0_76] : memref<1x16xf32, #tpu.memory_space<vmem>>, vector<1x16xf32>
    %173 = vector.broadcast %172 : vector<1x16xf32> to vector<32x16xf32>
    %174 = arith.mulf %171, %173 : vector<32x16xf32>
    %c0_77 = arith.constant 0 : index
    %c0_78 = arith.constant 0 : index
    %175 = vector.load %arg17[%c0_77, %c0_78] : memref<1x16xf32, #tpu.memory_space<vmem>>, vector<1x16xf32>
    %176 = vector.broadcast %175 : vector<1x16xf32> to vector<32x16xf32>
    %177 = arith.addf %174, %176 : vector<32x16xf32>
    %178 = vector.shape_cast %177 : vector<32x16xf32> to vector<2x16x16xf32>
    %c0_79 = arith.constant 0 : index
    %c0_80 = arith.constant 0 : index
    %c0_81 = arith.constant 0 : index
    %179 = vector.load %arg18[%c0_79, %c0_80, %c0_81] : memref<2x16x16xf32, #tpu.memory_space<vmem>>, vector<2x16x16xf32>
    tpu.vector_store %arg18[%c0_79, %c0_80, %c0_81], %178 {strides = array<i32>} : memref<2x16x16xf32, #tpu.memory_space<vmem>>, vector<2x16x16xf32>,
    return
  }
  func.func @transform_0(%arg0: i32) -> (i32, i32, i32) {
    %c0_i32 = arith.constant 0 : i32
    %c0_i32_0 = arith.constant 0 : i32
    %c0_i32_1 = arith.constant 0 : i32
    return %arg0, %c0_i32, %c0_i32_0 : i32, i32, i32
  }
  func.func @transform_1(%arg0: i32) -> (i32, i32) {
    %c0_i32 = arith.constant 0 : i32
    %c0_i32_0 = arith.constant 0 : i32
    %c0_i32_1 = arith.constant 0 : i32
    return %c0_i32, %c0_i32_0 : i32, i32
  }
  func.func @transform_2(%arg0: i32) -> (i32, i32) {
    %c0_i32 = arith.constant 0 : i32
    %c0_i32_0 = arith.constant 0 : i32
    %c0_i32_1 = arith.constant 0 : i32
    return %c0_i32, %c0_i32_0 : i32, i32
  }
  func.func @transform_3(%arg0: i32) -> (i32, i32) {
    %c0_i32 = arith.constant 0 : i32
    %c0_i32_0 = arith.constant 0 : i32
    %c0_i32_1 = arith.constant 0 : i32
    return %c0_i32, %c0_i32_0 : i32, i32
  }
  func.func @transform_4(%arg0: i32) -> (i32, i32) {
    %c0_i32 = arith.constant 0 : i32
    %c0_i32_0 = arith.constant 0 : i32
    %c0_i32_1 = arith.constant 0 : i32
    return %c0_i32, %c0_i32_0 : i32, i32
  }
  func.func @transform_5(%arg0: i32) -> (i32, i32) {
    %c0_i32 = arith.constant 0 : i32
    %c0_i32_0 = arith.constant 0 : i32
    %c0_i32_1 = arith.constant 0 : i32
    return %c0_i32, %c0_i32_0 : i32, i32
  }
  func.func @transform_6(%arg0: i32) -> (i32, i32) {
    %c0_i32 = arith.constant 0 : i32
    %c0_i32_0 = arith.constant 0 : i32
    %c0_i32_1 = arith.constant 0 : i32
    return %c0_i32, %c0_i32_0 : i32, i32
  }
  func.func @transform_7(%arg0: i32) -> (i32, i32) {
    %c0_i32 = arith.constant 0 : i32
    %c0_i32_0 = arith.constant 0 : i32
    %c0_i32_1 = arith.constant 0 : i32
    return %c0_i32, %c0_i32_0 : i32, i32
  }
  func.func @transform_8(%arg0: i32) -> (i32, i32) {
    %c0_i32 = arith.constant 0 : i32
    %c0_i32_0 = arith.constant 0 : i32
    %c0_i32_1 = arith.constant 0 : i32
    return %c0_i32, %c0_i32_0 : i32, i32
  }
  func.func @transform_9(%arg0: i32) -> (i32, i32) {
    %c0_i32 = arith.constant 0 : i32
    %c0_i32_0 = arith.constant 0 : i32
    %c0_i32_1 = arith.constant 0 : i32
    return %c0_i32, %c0_i32_0 : i32, i32
  }
  func.func @transform_10(%arg0: i32) -> (i32, i32) {
    %c0_i32 = arith.constant 0 : i32
    %c0_i32_0 = arith.constant 0 : i32
    %c0_i32_1 = arith.constant 0 : i32
    return %c0_i32, %c0_i32_0 : i32, i32
  }
  func.func @transform_11(%arg0: i32) -> (i32, i32) {
    %c0_i32 = arith.constant 0 : i32
    %c0_i32_0 = arith.constant 0 : i32
    %c0_i32_1 = arith.constant 0 : i32
    return %c0_i32, %c0_i32_0 : i32, i32
  }
  func.func @transform_12(%arg0: i32) -> (i32, i32) {
    %c0_i32 = arith.constant 0 : i32
    %c0_i32_0 = arith.constant 0 : i32
    %c0_i32_1 = arith.constant 0 : i32
    return %c0_i32, %c0_i32_0 : i32, i32
  }
  func.func @transform_13(%arg0: i32) -> (i32, i32) {
    %c0_i32 = arith.constant 0 : i32
    %c0_i32_0 = arith.constant 0 : i32
    %c0_i32_1 = arith.constant 0 : i32
    return %c0_i32, %c0_i32_0 : i32, i32
  }
  func.func @transform_14(%arg0: i32) -> (i32, i32) {
    %c0_i32 = arith.constant 0 : i32
    %c0_i32_0 = arith.constant 0 : i32
    %c0_i32_1 = arith.constant 0 : i32
    return %c0_i32, %c0_i32_0 : i32, i32
  }
  func.func @transform_15(%arg0: i32) -> (i32, i32) {
    %c0_i32 = arith.constant 0 : i32
    %c0_i32_0 = arith.constant 0 : i32
    %c0_i32_1 = arith.constant 0 : i32
    return %c0_i32, %c0_i32_0 : i32, i32
  }
  func.func @transform_16(%arg0: i32) -> (i32, i32) {
    %c0_i32 = arith.constant 0 : i32
    %c0_i32_0 = arith.constant 0 : i32
    %c0_i32_1 = arith.constant 0 : i32
    return %c0_i32, %c0_i32_0 : i32, i32
  }
  func.func @transform_17(%arg0: i32) -> (i32, i32, i32) {
    %c0_i32 = arith.constant 0 : i32
    %c0_i32_0 = arith.constant 0 : i32
    %c0_i32_1 = arith.constant 0 : i32
    return %arg0, %c0_i32, %c0_i32_0 : i32, i32, i32
  }
}

</mosaic_0001>

<llo_original>
// kernel: tpu_custom_call.1
$region0: #{tpu_custom_call.1}
  #allocation0 [shape = 'u32[]', space=smem, size = 0x4, offset = 0x4, fixed_abs, tag = 'smem constant byte address 0x4 - core index']
  #allocation1 [shape = 'u32[72,128]{1,0:T(1,128)}', space=vmem, size = 0x9000, scoped, tag = 'internal scratch']
  #allocation2 [shape = 'f32[32,16]{1,0:T(8,128)}', space=vmem, size = 0x4000, scoped, tag = 'scratch operand']
  %s0 = inlined_call_operand.vmem [shape: f32[8,16,8], index: 0, kind: input, shape index: {}]
  %s1 = inlined_call_operand.vmem [shape: f32[8,16], index: 1, kind: input, shape index: {}]
  %s2 = inlined_call_operand.vmem [shape: f32[1,16], index: 2, kind: input, shape index: {}]
  %s3 = inlined_call_operand.vmem [shape: f32[16,16], index: 3, kind: input, shape index: {}]
  %s4 = inlined_call_operand.vmem [shape: f32[1,16], index: 4, kind: input, shape index: {}]
  %s5 = inlined_call_operand.vmem [shape: f32[16,48], index: 5, kind: input, shape index: {}]
  %s6 = inlined_call_operand.vmem [shape: f32[1,48], index: 6, kind: input, shape index: {}]
  %s7 = inlined_call_operand.vmem [shape: f32[16,16], index: 7, kind: input, shape index: {}]
  %s8 = inlined_call_operand.vmem [shape: f32[1,16], index: 8, kind: input, shape index: {}]
  %s9 = inlined_call_operand.vmem [shape: f32[1,16], index: 9, kind: input, shape index: {}]
  %s10 = inlined_call_operand.vmem [shape: f32[1,16], index: 10, kind: input, shape index: {}]
  %s11 = inlined_call_operand.vmem [shape: f32[16,32], index: 11, kind: input, shape index: {}]
  %s12 = inlined_call_operand.vmem [shape: f32[1,32], index: 12, kind: input, shape index: {}]
  %s13 = inlined_call_operand.vmem [shape: f32[32,16], index: 13, kind: input, shape index: {}]
  %s14 = inlined_call_operand.vmem [shape: f32[1,16], index: 14, kind: input, shape index: {}]
  %s15 = inlined_call_operand.vmem [shape: f32[1,16], index: 15, kind: input, shape index: {}]
  %s16 = inlined_call_operand.vmem [shape: f32[1,16], index: 16, kind: input, shape index: {}]
  %s17 = inlined_call_operand.hbm [shape: f32[8,16,16], index: 17, kind: output, shape index: {}]
  %s18 = sld [smem:[#allocation0]]
  $region101: #{tpu_custom_call.1} parent=0
    _
  %s20 = ssub.s32 1, %s18
  %s21 = scalar_select 0, %s20, %s18
  $region1: #{tpu_custom_call.1} parent=0
    #allocation3 [shape = 'u8[32768]{0}', space=vmem, size = 0x8000, scoped, tag = 'output window, operand 0']
    #allocation4 [shape = 's32[2]{0}', space=sflag, size = 0x8, scoped, tag = 'scoped memory for tpu_custom_call.1']
    %22 = vsyncpa [#allocation4], 0
    %s23 = scalar_lea.sflag [#allocation4], 1
    %24 = vsyncpa %s23, 0
    loop: start=0, step=1, limit=6
    $region2: #{tpu_custom_call.1} parent=1 // loop_pre_header
      _
    $region3: #{tpu_custom_call.1} parent=1 // loop_header
      %s26 = sphi 0, %s30
      %p27 = scmp.ge.s32.totalorder %s26, 6
      %s36 = sphi 0, %s38
      %s39 = sphi 0, %s36
      %s40 = sphi 0, %s39
      %s56 = sphi 0, %s40
      %s60 = sphi 0, %s60
      %s62 = sphi 0, %s60
      %s63 = sphi 0, %s62
      %s77 = sphi 0, %s63
      %s81 = sphi 0, %s81
      %s83 = sphi 0, %s81
      %s84 = sphi 0, %s83
      %s98 = sphi 0, %s84
      %s102 = sphi 0, %s102
      %s104 = sphi 0, %s102
      %s105 = sphi 0, %s104
      %s119 = sphi 0, %s105
      %s123 = sphi 0, %s123
      %s125 = sphi 0, %s123
      %s126 = sphi 0, %s125
      %s140 = sphi 0, %s126
      %s144 = sphi 0, %s144
      %s146 = sphi 0, %s144
      %s147 = sphi 0, %s146
      %s161 = sphi 0, %s147
      %s165 = sphi 0, %s165
      %s167 = sphi 0, %s165
      %s168 = sphi 0, %s167
      %s182 = sphi 0, %s168
      %s186 = sphi 0, %s186
      %s188 = sphi 0, %s186
      %s189 = sphi 0, %s188
      %s203 = sphi 0, %s189
      %s207 = sphi 0, %s207
      %s209 = sphi 0, %s207
      %s210 = sphi 0, %s209
      %s224 = sphi 0, %s210
      %s228 = sphi 0, %s228
      %s230 = sphi 0, %s228
      %s231 = sphi 0, %s230
      %s245 = sphi 0, %s231
      %s249 = sphi 0, %s249
      %s251 = sphi 0, %s249
      %s252 = sphi 0, %s251
      %s266 = sphi 0, %s252
      %s270 = sphi 0, %s270
      %s272 = sphi 0, %s270
      %s273 = sphi 0, %s272
      %s287 = sphi 0, %s273
      %s291 = sphi 0, %s291
      %s293 = sphi 0, %s291
      %s294 = sphi 0, %s293
      %s308 = sphi 0, %s294
      %s312 = sphi 0, %s312
      %s314 = sphi 0, %s312
      %s315 = sphi 0, %s314
      %s329 = sphi 0, %s315
      %s333 = sphi 0, %s333
      %s335 = sphi 0, %s333
      %s336 = sphi 0, %s335
      %s350 = sphi 0, %s336
      %s354 = sphi 0, %s354
      %s356 = sphi 0, %s354
      %s357 = sphi 0, %s356
      %s371 = sphi 0, %s357
      %s375 = sphi 0, %s375
      %s377 = sphi 0, %s375
      %s378 = sphi 0, %s377
      %s392 = sphi 0, %s378
      %s398 = sphi 0, %s400
      %s401 = sphi 0, %s398
      %s402 = sphi 0, %s401
      %s418 = sphi 0, %s402
    $region4: #{tpu_custom_call.1} parent=1 // loop_header_branch
      %29 = sbr.rel (%p27) target = $region8
    $region5: #{tpu_custom_call.1} parent=1 // loop_body
      %s31 = ssub.s32 %s26, 1
      %s32 = ssub.s32 %s26, 2
      %s33 = sadd.s32 %s26, 1
      %s34 = ssub.s32 %s26, %s33
      %p35 = scmp.eq.s32.totalorder %s34, 0
      %s37 = sadd.s32 %s36, 1
      %s38 = scalar_select %p35, %s36, %s37
      %p41 = pneg %p35
      %p42 = scmp.eq.s32.totalorder %s26, 3
      %p43 = por %p41, %p42
      %p44 = scmp.ne.s32.totalorder %s36, %s39
      %p45 = scmp.eq.s32.totalorder %s26, 0
      %p46 = por %p44, %p45
      %p47 = scmp.ne.s32.totalorder %s36, %s39
      %p48 = scmp.eq.s32.totalorder %s31, 3
      %p49 = por %p47, %p48
      %p50 = scmp.ne.s32.totalorder %s39, %s40
      %p51 = scmp.eq.s32.totalorder %s31, 0
      %p52 = por %p50, %p51
      %p53 = scmp.ne.s32.totalorder %s39, %s40
      %p54 = scmp.eq.s32.totalorder %s32, 3
      %p55 = por %p53, %p54
      %p57 = scmp.ne.s32.totalorder %s40, %s56
      %p58 = scmp.eq.s32.totalorder %s32, 0
      %p59 = por %p57, %p58
      %s61 = sadd.s32 %s60, 1
      %p64 = scmp.eq.s32.totalorder %s26, 3
      %p65 = scmp.ne.s32.totalorder %s60, %s62
      %p66 = scmp.eq.s32.totalorder %s26, 0
      %p67 = por %p65, %p66
      %p68 = scmp.ne.s32.totalorder %s60, %s62
      %p69 = scmp.eq.s32.totalorder %s31, 3
      %p70 = por %p68, %p69
      %p71 = scmp.ne.s32.totalorder %s62, %s63
      %p72 = scmp.eq.s32.totalorder %s31, 0
      %p73 = por %p71, %p72
      %p74 = scmp.ne.s32.totalorder %s62, %s63
      %p75 = scmp.eq.s32.totalorder %s32, 3
      %p76 = por %p74, %p75
      %p78 = scmp.ne.s32.totalorder %s63, %s77
      %p79 = scmp.eq.s32.totalorder %s32, 0
      %p80 = por %p78, %p79
      %s82 = sadd.s32 %s81, 1
      %p85 = scmp.eq.s32.totalorder %s26, 3
      %p86 = scmp.ne.s32.totalorder %s81, %s83
      %p87 = scmp.eq.s32.totalorder %s26, 0
      %p88 = por %p86, %p87
      %p89 = scmp.ne.s32.totalorder %s81, %s83
      %p90 = scmp.eq.s32.totalorder %s31, 3
      %p91 = por %p89, %p90
      %p92 = scmp.ne.s32.totalorder %s83, %s84
      %p93 = scmp.eq.s32.totalorder %s31, 0
      %p94 = por %p92, %p93
      %p95 = scmp.ne.s32.totalorder %s83, %s84
      %p96 = scmp.eq.s32.totalorder %s32, 3
      %p97 = por %p95, %p96
      %p99 = scmp.ne.s32.totalorder %s84, %s98
      %p100 = scmp.eq.s32.totalorder %s32, 0
      %p101 = por %p99, %p100
      %s103 = sadd.s32 %s102, 1
      %p106 = scmp.eq.s32.totalorder %s26, 3
      %p107 = scmp.ne.s32.totalorder %s102, %s104
      %p108 = scmp.eq.s32.totalorder %s26, 0
      %p109 = por %p107, %p108
      %p110 = scmp.ne.s32.totalorder %s102, %s104
      %p111 = scmp.eq.s32.totalorder %s31, 3
      %p112 = por %p110, %p111
      %p113 = scmp.ne.s32.totalorder %s104, %s105
      %p114 = scmp.eq.s32.totalorder %s31, 0
      %p115 = por %p113, %p114
      %p116 = scmp.ne.s32.totalorder %s104, %s105
      %p117 = scmp.eq.s32.totalorder %s32, 3
      %p118 = por %p116, %p117
      %p120 = scmp.ne.s32.totalorder %s105, %s119
      %p121 = scmp.eq.s32.totalorder %s32, 0
      %p122 = por %p120, %p121
      %s124 = sadd.s32 %s123, 1
      %p127 = scmp.eq.s32.totalorder %s26, 3
      %p128 = scmp.ne.s32.totalorder %s123, %s125
      %p129 = scmp.eq.s32.totalorder %s26, 0
      %p130 = por %p128, %p129
      %p131 = scmp.ne.s32.totalorder %s123, %s125
      %p132 = scmp.eq.s32.totalorder %s31, 3
      %p133 = por %p131, %p132
      %p134 = scmp.ne.s32.totalorder %s125, %s126
      %p135 = scmp.eq.s32.totalorder %s31, 0
      %p136 = por %p134, %p135
      %p137 = scmp.ne.s32.totalorder %s125, %s126
      %p138 = scmp.eq.s32.totalorder %s32, 3
      %p139 = por %p137, %p138
      %p141 = scmp.ne.s32.totalorder %s126, %s140
      %p142 = scmp.eq.s32.totalorder %s32, 0
      %p143 = por %p141, %p142
      %s145 = sadd.s32 %s144, 1
      %p148 = scmp.eq.s32.totalorder %s26, 3
      %p149 = scmp.ne.s32.totalorder %s144, %s146
      %p150 = scmp.eq.s32.totalorder %s26, 0
      %p151 = por %p149, %p150
      %p152 = scmp.ne.s32.totalorder %s144, %s146
      %p153 = scmp.eq.s32.totalorder %s31, 3
      %p154 = por %p152, %p153
      %p155 = scmp.ne.s32.totalorder %s146, %s147
      %p156 = scmp.eq.s32.totalorder %s31, 0
      %p157 = por %p155, %p156
      %p158 = scmp.ne.s32.totalorder %s146, %s147
      %p159 = scmp.eq.s32.totalorder %s32, 3
      %p160 = por %p158, %p159
      %p162 = scmp.ne.s32.totalorder %s147, %s161
      %p163 = scmp.eq.s32.totalorder %s32, 0
      %p164 = por %p162, %p163
      %s166 = sadd.s32 %s165, 1
      %p169 = scmp.eq.s32.totalorder %s26, 3
      %p170 = scmp.ne.s32.totalorder %s165, %s167
      %p171 = scmp.eq.s32.totalorder %s26, 0
      %p172 = por %p170, %p171
      %p173 = scmp.ne.s32.totalorder %s165, %s167
      %p174 = scmp.eq.s32.totalorder %s31, 3
      %p175 = por %p173, %p174
      %p176 = scmp.ne.s32.totalorder %s167, %s168
      %p177 = scmp.eq.s32.totalorder %s31, 0
      %p178 = por %p176, %p177
      %p179 = scmp.ne.s32.totalorder %s167, %s168
      %p180 = scmp.eq.s32.totalorder %s32, 3
      %p181 = por %p179, %p180
      %p183 = scmp.ne.s32.totalorder %s168, %s182
      %p184 = scmp.eq.s32.totalorder %s32, 0
      %p185 = por %p183, %p184
      %s187 = sadd.s32 %s186, 1
      %p190 = scmp.eq.s32.totalorder %s26, 3
      %p191 = scmp.ne.s32.totalorder %s186, %s188
      %p192 = scmp.eq.s32.totalorder %s26, 0
      %p193 = por %p191, %p192
      %p194 = scmp.ne.s32.totalorder %s186, %s188
      %p195 = scmp.eq.s32.totalorder %s31, 3
      %p196 = por %p194, %p195
      %p197 = scmp.ne.s32.totalorder %s188, %s189
      %p198 = scmp.eq.s32.totalorder %s31, 0
      %p199 = por %p197, %p198
      %p200 = scmp.ne.s32.totalorder %s188, %s189
      %p201 = scmp.eq.s32.totalorder %s32, 3
      %p202 = por %p200, %p201
      %p204 = scmp.ne.s32.totalorder %s189, %s203
      %p205 = scmp.eq.s32.totalorder %s32, 0
      %p206 = por %p204, %p205
      %s208 = sadd.s32 %s207, 1
      %p211 = scmp.eq.s32.totalorder %s26, 3
      %p212 = scmp.ne.s32.totalorder %s207, %s209
      %p213 = scmp.eq.s32.totalorder %s26, 0
      %p214 = por %p212, %p213
      %p215 = scmp.ne.s32.totalorder %s207, %s209
      %p216 = scmp.eq.s32.totalorder %s31, 3
      %p217 = por %p215, %p216
      %p218 = scmp.ne.s32.totalorder %s209, %s210
      %p219 = scmp.eq.s32.totalorder %s31, 0
      %p220 = por %p218, %p219
      %p221 = scmp.ne.s32.totalorder %s209, %s210
      %p222 = scmp.eq.s32.totalorder %s32, 3
      %p223 = por %p221, %p222
      %p225 = scmp.ne.s32.totalorder %s210, %s224
      %p226 = scmp.eq.s32.totalorder %s32, 0
      %p227 = por %p225, %p226
      %s229 = sadd.s32 %s228, 1
      %p232 = scmp.eq.s32.totalorder %s26, 3
      %p233 = scmp.ne.s32.totalorder %s228, %s230
      %p234 = scmp.eq.s32.totalorder %s26, 0
      %p235 = por %p233, %p234
      %p236 = scmp.ne.s32.totalorder %s228, %s230
      %p237 = scmp.eq.s32.totalorder %s31, 3
      %p238 = por %p236, %p237
      %p239 = scmp.ne.s32.totalorder %s230, %s231
      %p240 = scmp.eq.s32.totalorder %s31, 0
      %p241 = por %p239, %p240
      %p242 = scmp.ne.s32.totalorder %s230, %s231
      %p243 = scmp.eq.s32.totalorder %s32, 3
      %p244 = por %p242, %p243
      %p246 = scmp.ne.s32.totalorder %s231, %s245
      %p247 = scmp.eq.s32.totalorder %s32, 0
      %p248 = por %p246, %p247
      %s250 = sadd.s32 %s249, 1
      %p253 = scmp.eq.s32.totalorder %s26, 3
      %p254 = scmp.ne.s32.totalorder %s249, %s251
      %p255 = scmp.eq.s32.totalorder %s26, 0
      %p256 = por %p254, %p255
      %p257 = scmp.ne.s32.totalorder %s249, %s251
      %p258 = scmp.eq.s32.totalorder %s31, 3
      %p259 = por %p257, %p258
      %p260 = scmp.ne.s32.totalorder %s251, %s252
      %p261 = scmp.eq.s32.totalorder %s31, 0
      %p262 = por %p260, %p261
      %p263 = scmp.ne.s32.totalorder %s251, %s252
      %p264 = scmp.eq.s32.totalorder %s32, 3
      %p265 = por %p263, %p264
      %p267 = scmp.ne.s32.totalorder %s252, %s266
      %p268 = scmp.eq.s32.totalorder %s32, 0
      %p269 = por %p267, %p268
      %s271 = sadd.s32 %s270, 1
      %p274 = scmp.eq.s32.totalorder %s26, 3
      %p275 = scmp.ne.s32.totalorder %s270, %s272
      %p276 = scmp.eq.s32.totalorder %s26, 0
      %p277 = por %p275, %p276
      %p278 = scmp.ne.s32.totalorder %s270, %s272
      %p279 = scmp.eq.s32.totalorder %s31, 3
      %p280 = por %p278, %p279
      %p281 = scmp.ne.s32.totalorder %s272, %s273
      %p282 = scmp.eq.s32.totalorder %s31, 0
      %p283 = por %p281, %p282
      %p284 = scmp.ne.s32.totalorder %s272, %s273
      %p285 = scmp.eq.s32.totalorder %s32, 3
      %p286 = por %p284, %p285
      %p288 = scmp.ne.s32.totalorder %s273, %s287
      %p289 = scmp.eq.s32.totalorder %s32, 0
      %p290 = por %p288, %p289
      %s292 = sadd.s32 %s291, 1
      %p295 = scmp.eq.s32.totalorder %s26, 3
      %p296 = scmp.ne.s32.totalorder %s291, %s293
      %p297 = scmp.eq.s32.totalorder %s26, 0
      %p298 = por %p296, %p297
      %p299 = scmp.ne.s32.totalorder %s291, %s293
      %p300 = scmp.eq.s32.totalorder %s31, 3
      %p301 = por %p299, %p300
      %p302 = scmp.ne.s32.totalorder %s293, %s294
      %p303 = scmp.eq.s32.totalorder %s31, 0
      %p304 = por %p302, %p303
      %p305 = scmp.ne.s32.totalorder %s293, %s294
      %p306 = scmp.eq.s32.totalorder %s32, 3
      %p307 = por %p305, %p306
      %p309 = scmp.ne.s32.totalorder %s294, %s308
      %p310 = scmp.eq.s32.totalorder %s32, 0
      %p311 = por %p309, %p310
      %s313 = sadd.s32 %s312, 1
      %p316 = scmp.eq.s32.totalorder %s26, 3
      %p317 = scmp.ne.s32.totalorder %s312, %s314
      %p318 = scmp.eq.s32.totalorder %s26, 0
      %p319 = por %p317, %p318
      %p320 = scmp.ne.s32.totalorder %s312, %s314
      %p321 = scmp.eq.s32.totalorder %s31, 3
      %p322 = por %p320, %p321
      %p323 = scmp.ne.s32.totalorder %s314, %s315
      %p324 = scmp.eq.s32.totalorder %s31, 0
      %p325 = por %p323, %p324
      %p326 = scmp.ne.s32.totalorder %s314, %s315
      %p327 = scmp.eq.s32.totalorder %s32, 3
      %p328 = por %p326, %p327
      %p330 = scmp.ne.s32.totalorder %s315, %s329
      %p331 = scmp.eq.s32.totalorder %s32, 0
      %p332 = por %p330, %p331
      %s334 = sadd.s32 %s333, 1
      %p337 = scmp.eq.s32.totalorder %s26, 3
      %p338 = scmp.ne.s32.totalorder %s333, %s335
      %p339 = scmp.eq.s32.totalorder %s26, 0
      %p340 = por %p338, %p339
      %p341 = scmp.ne.s32.totalorder %s333, %s335
      %p342 = scmp.eq.s32.totalorder %s31, 3
      %p343 = por %p341, %p342
      %p344 = scmp.ne.s32.totalorder %s335, %s336
      %p345 = scmp.eq.s32.totalorder %s31, 0
      %p346 = por %p344, %p345
      %p347 = scmp.ne.s32.totalorder %s335, %s336
      %p348 = scmp.eq.s32.totalorder %s32, 3
      %p349 = por %p347, %p348
      %p351 = scmp.ne.s32.totalorder %s336, %s350
      %p352 = scmp.eq.s32.totalorder %s32, 0
      %p353 = por %p351, %p352
      %s355 = sadd.s32 %s354, 1
      %p358 = scmp.eq.s32.totalorder %s26, 3
      %p359 = scmp.ne.s32.totalorder %s354, %s356
      %p360 = scmp.eq.s32.totalorder %s26, 0
      %p361 = por %p359, %p360
      %p362 = scmp.ne.s32.totalorder %s354, %s356
      %p363 = scmp.eq.s32.totalorder %s31, 3
      %p364 = por %p362, %p363
      %p365 = scmp.ne.s32.totalorder %s356, %s357
      %p366 = scmp.eq.s32.totalorder %s31, 0
      %p367 = por %p365, %p366
      %p368 = scmp.ne.s32.totalorder %s356, %s357
      %p369 = scmp.eq.s32.totalorder %s32, 3
      %p370 = por %p368, %p369
      %p372 = scmp.ne.s32.totalorder %s357, %s371
      %p373 = scmp.eq.s32.totalorder %s32, 0
      %p374 = por %p372, %p373
      %s376 = sadd.s32 %s375, 1
      %p379 = scmp.eq.s32.totalorder %s26, 3
      %p380 = scmp.ne.s32.totalorder %s375, %s377
      %p381 = scmp.eq.s32.totalorder %s26, 0
      %p382 = por %p380, %p381
      %p383 = scmp.ne.s32.totalorder %s375, %s377
      %p384 = scmp.eq.s32.totalorder %s31, 3
      %p385 = por %p383, %p384
      %p386 = scmp.ne.s32.totalorder %s377, %s378
      %p387 = scmp.eq.s32.totalorder %s31, 0
      %p388 = por %p386, %p387
      %p389 = scmp.ne.s32.totalorder %s377, %s378
      %p390 = scmp.eq.s32.totalorder %s32, 3
      %p391 = por %p389, %p390
      %p393 = scmp.ne.s32.totalorder %s378, %s392
      %p394 = scmp.eq.s32.totalorder %s32, 0
      %p395 = por %p393, %p394
      %s396 = ssub.s32 %s26, %s33
      %p397 = scmp.eq.s32.totalorder %s396, 0
      %s399 = sadd.s32 %s398, 1
      %s400 = scalar_select %p397, %s398, %s399
      %p403 = pneg %p397
      %p404 = scmp.eq.s32.totalorder %s26, 3
      %p405 = por %p403, %p404
      %p406 = scmp.ne.s32.totalorder %s398, %s401
      %p407 = scmp.eq.s32.totalorder %s26, 0
      %p408 = por %p406, %p407
      %p409 = scmp.ne.s32.totalorder %s398, %s401
      %p410 = scmp.eq.s32.totalorder %s31, 3
      %p411 = por %p409, %p410
      %p412 = scmp.ne.s32.totalorder %s401, %s402
      %p413 = scmp.eq.s32.totalorder %s31, 0
      %p414 = por %p412, %p413
      %p415 = scmp.ne.s32.totalorder %s401, %s402
      %p416 = scmp.eq.s32.totalorder %s32, 3
      %p417 = por %p415, %p416
      %p419 = scmp.ne.s32.totalorder %s402, %s418
      %p420 = scmp.eq.s32.totalorder %s32, 0
      %p421 = por %p419, %p420
      %p422 = scmp.le.s32.totalorder 1, %s26
      %p423 = scmp.lt.s32.totalorder %s26, 5
      %p424 = pnand %p422, %p423
      %p425 = pneg %p424
      // Predicated region
      $region9: #{tpu_custom_call.1} parent=5 // pred_check
        _
      $region10: #{tpu_custom_call.1} parent=5 // pred_check_branch
        %427 = sbr.rel (%p424) target = $region12
      $region11: #{tpu_custom_call.1} parent=5 // pred_region
        %s428 = ssub.s32 %s26, 1
        // Predicated region
        $region13: #{tpu_custom_call.1} parent=11 // pred_check
          %p429 = pneg %p73
        $region14: #{tpu_custom_call.1} parent=11 // pred_check_branch
          %431 = sbr.rel (%p429) target = $region16
        $region15: #{tpu_custom_call.1} parent=11 // pred_region
          _
        $region16: #{tpu_custom_call.1} parent=11 // pred_fallthru
          _
        // Predicated region
        $region17: #{tpu_custom_call.1} parent=11 // pred_check
          %p432 = pneg %p94
        $region18: #{tpu_custom_call.1} parent=11 // pred_check_branch
          %434 = sbr.rel (%p432) target = $region20
        $region19: #{tpu_custom_call.1} parent=11 // pred_region
          _
        $region20: #{tpu_custom_call.1} parent=11 // pred_fallthru
          _
        // Predicated region
        $region21: #{tpu_custom_call.1} parent=11 // pred_check
          %p435 = pneg %p115
        $region22: #{tpu_custom_call.1} parent=11 // pred_check_branch
          %437 = sbr.rel (%p435) target = $region24
        $region23: #{tpu_custom_call.1} parent=11 // pred_region
          _
        $region24: #{tpu_custom_call.1} parent=11 // pred_fallthru
          _
        // Predicated region
        $region25: #{tpu_custom_call.1} parent=11 // pred_check
          %p438 = pneg %p136
        $region26: #{tpu_custom_call.1} parent=11 // pred_check_branch
          %440 = sbr.rel (%p438) target = $region28
        $region27: #{tpu_custom_call.1} parent=11 // pred_region
          _
        $region28: #{tpu_custom_call.1} parent=11 // pred_fallthru
          _
        // Predicated region
        $region29: #{tpu_custom_call.1} parent=11 // pred_check
          %p441 = pneg %p157
        $region30: #{tpu_custom_call.1} parent=11 // pred_check_branch
          %443 = sbr.rel (%p441) target = $region32
        $region31: #{tpu_custom_call.1} parent=11 // pred_region
          _
        $region32: #{tpu_custom_call.1} parent=11 // pred_fallthru
          _
        // Predicated region
        $region33: #{tpu_custom_call.1} parent=11 // pred_check
          %p444 = pneg %p178
        $region34: #{tpu_custom_call.1} parent=11 // pred_check_branch
          %446 = sbr.rel (%p444) target = $region36
        $region35: #{tpu_custom_call.1} parent=11 // pred_region
          _
        $region36: #{tpu_custom_call.1} parent=11 // pred_fallthru
          _
        // Predicated region
        $region37: #{tpu_custom_call.1} parent=11 // pred_check
          %p447 = pneg %p199
        $region38: #{tpu_custom_call.1} parent=11 // pred_check_branch
          %449 = sbr.rel (%p447) target = $region40
        $region39: #{tpu_custom_call.1} parent=11 // pred_region
          _
        $region40: #{tpu_custom_call.1} parent=11 // pred_fallthru
          _
        // Predicated region
        $region41: #{tpu_custom_call.1} parent=11 // pred_check
          %p450 = pneg %p220
        $region42: #{tpu_custom_call.1} parent=11 // pred_check_branch
          %452 = sbr.rel (%p450) target = $region44
        $region43: #{tpu_custom_call.1} parent=11 // pred_region
          _
        $region44: #{tpu_custom_call.1} parent=11 // pred_fallthru
          _
        // Predicated region
        $region45: #{tpu_custom_call.1} parent=11 // pred_check
          %p453 = pneg %p241
        $region46: #{tpu_custom_call.1} parent=11 // pred_check_branch
          %455 = sbr.rel (%p453) target = $region48
        $region47: #{tpu_custom_call.1} parent=11 // pred_region
          _
        $region48: #{tpu_custom_call.1} parent=11 // pred_fallthru
          _
        // Predicated region
        $region49: #{tpu_custom_call.1} parent=11 // pred_check
          %p456 = pneg %p262
        $region50: #{tpu_custom_call.1} parent=11 // pred_check_branch
          %458 = sbr.rel (%p456) target = $region52
        $region51: #{tpu_custom_call.1} parent=11 // pred_region
          _
        $region52: #{tpu_custom_call.1} parent=11 // pred_fallthru
          _
        // Predicated region
        $region53: #{tpu_custom_call.1} parent=11 // pred_check
          %p459 = pneg %p283
        $region54: #{tpu_custom_call.1} parent=11 // pred_check_branch
          %461 = sbr.rel (%p459) target = $region56
        $region55: #{tpu_custom_call.1} parent=11 // pred_region
          _
        $region56: #{tpu_custom_call.1} parent=11 // pred_fallthru
          _
        // Predicated region
        $region57: #{tpu_custom_call.1} parent=11 // pred_check
          %p462 = pneg %p304
        $region58: #{tpu_custom_call.1} parent=11 // pred_check_branch
          %464 = sbr.rel (%p462) target = $region60
        $region59: #{tpu_custom_call.1} parent=11 // pred_region
          _
        $region60: #{tpu_custom_call.1} parent=11 // pred_fallthru
          _
        // Predicated region
        $region61: #{tpu_custom_call.1} parent=11 // pred_check
          %p465 = pneg %p325
        $region62: #{tpu_custom_call.1} parent=11 // pred_check_branch
          %467 = sbr.rel (%p465) target = $region64
        $region63: #{tpu_custom_call.1} parent=11 // pred_region
          _
        $region64: #{tpu_custom_call.1} parent=11 // pred_fallthru
          _
        // Predicated region
        $region65: #{tpu_custom_call.1} parent=11 // pred_check
          %p468 = pneg %p346
        $region66: #{tpu_custom_call.1} parent=11 // pred_check_branch
          %470 = sbr.rel (%p468) target = $region68
        $region67: #{tpu_custom_call.1} parent=11 // pred_region
          _
        $region68: #{tpu_custom_call.1} parent=11 // pred_fallthru
          _
        // Predicated region
        $region69: #{tpu_custom_call.1} parent=11 // pred_check
          %p471 = pneg %p367
        $region70: #{tpu_custom_call.1} parent=11 // pred_check_branch
          %473 = sbr.rel (%p471) target = $region72
        $region71: #{tpu_custom_call.1} parent=11 // pred_region
          _
        $region72: #{tpu_custom_call.1} parent=11 // pred_fallthru
          _
        // Predicated region
        $region73: #{tpu_custom_call.1} parent=11 // pred_check
          %p474 = pneg %p388
        $region74: #{tpu_custom_call.1} parent=11 // pred_check_branch
          %476 = sbr.rel (%p474) target = $region76
        $region75: #{tpu_custom_call.1} parent=11 // pred_region
          _
        $region76: #{tpu_custom_call.1} parent=11 // pred_fallthru
          _
      $region12: #{tpu_custom_call.1} parent=5 // pred_fallthru
        _
      %p477 = scmp.lt.s32.totalorder %s26, 4
      // Predicated region
      $region77: #{tpu_custom_call.1} parent=5 // pred_check
        %p478 = pneg %p477
      $region78: #{tpu_custom_call.1} parent=5 // pred_check_branch
        %480 = sbr.rel (%p478) target = $region80
      $region79: #{tpu_custom_call.1} parent=5 // pred_region
        // Predicated region
        $region81: #{tpu_custom_call.1} parent=79 // pred_check
          %p481 = pneg %p46
        $region82: #{tpu_custom_call.1} parent=79 // pred_check_branch
          %483 = sbr.rel (%p481) target = $region84
        $region83: #{tpu_custom_call.1} parent=79 // pred_region
          %s484 = smul.u32 2, %s26
          %p485 = scmp.lt.s32.totalorder %s484, 7
          %s486 = scalar_select %p485, %s484, 7
          %s487 = smul.addr %s486, 2
          %s488 = smul.addr %s487, 8
          %s489 = scalar_lea.vmem %s0, %s488
          %s490 = smul.u32 2, %s26
        $region84: #{tpu_custom_call.1} parent=79 // pred_fallthru
          _
      $region80: #{tpu_custom_call.1} parent=5 // pred_fallthru
        _
      %p491 = scmp.le.s32.totalorder 1, %s26
      %p492 = scmp.lt.s32.totalorder %s26, 5
      %p493 = pnand %p491, %p492
      %p494 = pneg %p493
      // Predicated region
      $region85: #{tpu_custom_call.1} parent=5 // pred_check
        _
      $region86: #{tpu_custom_call.1} parent=5 // pred_check_branch
        %496 = sbr.rel (%p493) target = $region88
      $region87: #{tpu_custom_call.1} parent=5 // pred_region
        %s497 = ssub.s32 %s26, 1
        %s498 = smul.u32 2, %s31
        %p499 = scmp.lt.s32.totalorder %s498, 7
        %s500 = scalar_select %p499, %s498, 7
        %s501 = smul.addr %s500, 2
        %s502 = smul.addr %s501, 8
        %s503 = scalar_lea.vmem %s0, %s502
        %p504 = pneg %p52
        %p505 = pneg %p49
        %p506 = pneg %p73
        %p507 = pneg %p70
        %p508 = pneg %p94
        %p509 = pneg %p91
        %p510 = pneg %p115
        %p511 = pneg %p112
        %p512 = pneg %p136
        %p513 = pneg %p133
        %p514 = pneg %p157
        %p515 = pneg %p154
        %p516 = pneg %p178
        %p517 = pneg %p175
        %p518 = pneg %p199
        %p519 = pneg %p196
        %p520 = pneg %p220
        %p521 = pneg %p217
        %p522 = pneg %p241
        %p523 = pneg %p238
        %p524 = pneg %p262
        %p525 = pneg %p259
        %p526 = pneg %p283
        %p527 = pneg %p280
        %p528 = pneg %p304
        %p529 = pneg %p301
        %p530 = pneg %p325
        %p531 = pneg %p322
        %p532 = pneg %p346
        %p533 = pneg %p343
        %p534 = pneg %p367
        %p535 = pneg %p364
        %p536 = pneg %p388
        %p537 = pneg %p385
        %p538 = pneg %p414
        %p539 = pneg %p411
        %s540 = sand.u32 %s401, 1
        %s541 = scalar_lea.sflag [#allocation4], %s540
        %s542 = sand.u32 %s401, 1
        %s543 = smul.addr %s542, 32
        %s544 = scalar_lea.vmem [#allocation3], %s543
        %s545 = smul.u32 2, %s31
        %p546 = scmp.lt.s32.totalorder %s545, 7
        %s547 = scalar_select %p546, %s545, 7
        %s548 = smul.addr %s547, 2
        %s549 = smul.addr %s548, 8
        %s550 = scalar_lea.vmem %s0, %s549
        %s551 = smul.u32 2, %s31
        %s552 = smul.u32 2, %s31
        %v553 = vld [vmem:[%s550] sm:$0xff]
        %v554 = vld [vmem:[%s550 + $0x8] sm:$0xff]
        %v555 = vld [vmem:[%s550 + $0x10] sm:$0xff]
        %v556 = vld [vmem:[%s550 + $0x18] sm:$0xff]
        %v557 = vld [vmem:[%s1] sm:$0xff]
        %v558 = vld [vmem:[%s2] sm:$0x1]
        %v560 = vperm.slane %v558, 0
        %vm562 = vcmask 64512
        %v564 = vsel %vm562, %v553, 0
        %v567 = vsel %vm562, %v554, 0
        %v570 = vsel %vm562, %v555, 0
        %v573 = vsel %vm562, %v556, 0
        %575 = vmatpush.msra.mxu0 0.0
        %576 = vmatpush.msra.mxu0 0.0
        %577 = vmatpush.msra.mxu0 0.0
        %578 = vmatpush.msra.mxu0 0.0
        %579 = vmatpush.msra.mxu0 0.0
        %580 = vmatpush.msra.mxu0 0.0
        %581 = vmatpush.msra.mxu0 0.0
        %582 = vmatpush.msra.mxu0 0.0
        %583 = vmatpush.msra.mxu0 0.0
        %584 = vmatpush.msra.mxu0 0.0
        %585 = vmatpush.msra.mxu0 0.0
        %586 = vmatpush.msra.mxu0 0.0
        %587 = vmatpush.msra.mxu0 0.0
        %588 = vmatpush.msra.mxu0 0.0
        %589 = vmatpush.msra.mxu0 0.0
        %590 = vmatpush.msra.mxu0 %v557
        %591 = vmatmul.f32.gmra.mxu0 %v564
        %v592 = vpop.f32.mrf.mxu0
        %v593 = vadd.f32 %v560, %v592
        %594 = vmatmul.f32.gmra.mxu0 %v567
        %v595 = vpop.f32.mrf.mxu0
        %v596 = vadd.f32 %v560, %v595
        %597 = vmatmul.f32.gmra.mxu0 %v570
        %v598 = vpop.f32.mrf.mxu0
        %v599 = vadd.f32 %v560, %v598
        %600 = vmatmul.f32.gmra.mxu0 %v573
        %v601 = vpop.f32.mrf.mxu0
        %v602 = vadd.f32 %v560, %v601
        %603 = vdwg.mxu0
        %vm604 = vcmp.gt.f32.partialorder %v593, 0.0
        %vm605 = vcmp.gt.f32.partialorder %v596, 0.0
        %vm606 = vcmp.gt.f32.partialorder %v599, 0.0
        %vm607 = vcmp.gt.f32.partialorder %v602, 0.0
        %v608 = vmul.f32 %v593, 0.01
        %v609 = vmul.f32 %v596, 0.01
        %v610 = vmul.f32 %v599, 0.01
        %v611 = vmul.f32 %v602, 0.01
        %v612 = vsel %vm604, %v593, %v608
        %v613 = vsel %vm605, %v596, %v609
        %v614 = vsel %vm606, %v599, %v610
        %v615 = vsel %vm607, %v602, %v611
        %v616 = vld [vmem:[%s3] sm:$0xff]
        %v617 = vld [vmem:[%s3 + $0x8] sm:$0xff]
        %v618 = vld [vmem:[%s4] sm:$0x1]
        %v620 = vperm.slane %v618, 0
        %vm622 = vcmask 130048
        %v624 = vsel %vm622, %v612, 0
        %v627 = vsel %vm622, %v613, 0
        %v630 = vsel %vm622, %v614, 0
        %v633 = vsel %vm622, %v615, 0
        %635 = vmatpush.msra.mxu0 0.0
        %636 = vmatpush.msra.mxu0 0.0
        %637 = vmatpush.msra.mxu0 0.0
        %638 = vmatpush.msra.mxu0 0.0
        %639 = vmatpush.msra.mxu0 0.0
        %640 = vmatpush.msra.mxu0 0.0
        %641 = vmatpush.msra.mxu0 0.0
        %642 = vmatpush.msra.mxu0 0.0
        %643 = vmatpush.msra.mxu0 0.0
        %644 = vmatpush.msra.mxu0 0.0
        %645 = vmatpush.msra.mxu0 0.0
        %646 = vmatpush.msra.mxu0 0.0
        %647 = vmatpush.msra.mxu0 0.0
        %648 = vmatpush.msra.mxu0 0.0
        %649 = vmatpush.msra.mxu0 %v617
        %650 = vmatpush.msra.mxu0 %v616
        %651 = vmatmul.f32.gmra.mxu0 %v624
        %v652 = vpop.f32.mrf.mxu0
        %v653 = vadd.f32 %v620, %v652
        %654 = vmatmul.f32.gmra.mxu0 %v627
        %v655 = vpop.f32.mrf.mxu0
        %v656 = vadd.f32 %v620, %v655
        %657 = vmatmul.f32.gmra.mxu0 %v630
        %v658 = vpop.f32.mrf.mxu0
        %v659 = vadd.f32 %v620, %v658
        %660 = vmatmul.f32.gmra.mxu0 %v633
        %v661 = vpop.f32.mrf.mxu0
        %v662 = vadd.f32 %v620, %v661
        %663 = vdwg.mxu0
        %v664 = vld [vmem:[%s5] sm:$0xff]
        %v665 = vld [vmem:[%s5 + $0x8] sm:$0xff]
        %v666 = vld [vmem:[%s6] sm:$0x1]
        %v668 = vperm.slane %v666, 0
        %v671 = vsel %vm622, %v653, 0
        %v674 = vsel %vm622, %v656, 0
        %v677 = vsel %vm622, %v659, 0
        %v680 = vsel %vm622, %v662, 0
        %682 = vmatpush.msra.mxu0 0.0
        %683 = vmatpush.msra.mxu0 0.0
        %684 = vmatpush.msra.mxu0 0.0
        %685 = vmatpush.msra.mxu0 0.0
        %686 = vmatpush.msra.mxu0 0.0
        %687 = vmatpush.msra.mxu0 0.0
        %688 = vmatpush.msra.mxu0 0.0
        %689 = vmatpush.msra.mxu0 0.0
        %690 = vmatpush.msra.mxu0 0.0
        %691 = vmatpush.msra.mxu0 0.0
        %692 = vmatpush.msra.mxu0 0.0
        %693 = vmatpush.msra.mxu0 0.0
        %694 = vmatpush.msra.mxu0 0.0
        %695 = vmatpush.msra.mxu0 0.0
        %696 = vmatpush.msra.mxu0 %v665
        %697 = vmatpush.msra.mxu0 %v664
        %698 = vmatmul.f32.gmra.mxu0 %v671
        %v699 = vpop.f32.mrf.mxu0
        %v700 = vadd.f32 %v668, %v699
        %701 = vmatmul.f32.gmra.mxu0 %v674
        %v702 = vpop.f32.mrf.mxu0
        %v703 = vadd.f32 %v668, %v702
        %704 = vmatmul.f32.gmra.mxu0 %v677
        %v705 = vpop.f32.mrf.mxu0
        %v706 = vadd.f32 %v668, %v705
        %707 = vmatmul.f32.gmra.mxu0 %v680
        %v708 = vpop.f32.mrf.mxu0
        %v709 = vadd.f32 %v668, %v708
        %710 = vdwg.mxu0
        %713 = vrot.lane.b32.xlu0 %v700, 112
        %v714 = vpop.permute.xlu0 %713
        %715 = vrot.lane.b32.xlu0 %v703, 112
        %v716 = vpop.permute.xlu0 %715
        %vm717 = vcmask 31744
        %v718 = vsel %vm717, %v700, 0
        %v720 = vsel %vm717, %v703, 0
        %v722 = vsel %vm717, %v714, 0
        %v724 = vsel %vm717, %v716, 0
        %726 = vmatpush.xpose.msra.mxu0 0.0
        %727 = vmatpush.xpose.msra.mxu0 0.0
        %728 = vmatpush.xpose.msra.mxu0 0.0
        %729 = vmatpush.xpose.msra.mxu0 0.0
        %730 = vmatpush.xpose.msra.mxu0 0.0
        %731 = vmatpush.xpose.msra.mxu0 0.0
        %732 = vmatpush.xpose.msra.mxu0 0.0
        %733 = vmatpush.xpose.msra.mxu0 0.0
        %734 = vmatpush.xpose.msra.mxu0 0.0
        %735 = vmatpush.xpose.msra.mxu0 0.0
        %736 = vmatpush.xpose.msra.mxu0 0.0
        %737 = vmatpush.xpose.msra.mxu0 0.0
        %738 = vmatpush.xpose.msra.mxu0 0.0
        %739 = vmatpush.xpose.msra.mxu0 0.0
        %740 = vmatpush.xpose.msra.mxu0 %v724
        %741 = vmatpush.xpose.msra.mxu0 %v722
        %742 = vmatmul.f32.gmra.mxu0 %v718
        %v743 = vpop.f32.mrf.mxu0
        %v744 = vadd.f32 0.0, %v743
        %745 = vmatmul.f32.gmra.mxu0 %v720
        %v746 = vpop.f32.mrf.mxu0
        %v747 = vadd.f32 0.0, %v746
        %748 = vdwg.mxu0
        %751 = vrot.lane.b32.xlu0 %v706, 112
        %v752 = vpop.permute.xlu0 %751
        %753 = vrot.lane.b32.xlu0 %v709, 112
        %v754 = vpop.permute.xlu0 %753
        %v755 = vsel %vm717, %v706, 0
        %v757 = vsel %vm717, %v709, 0
        %v759 = vsel %vm717, %v752, 0
        %v761 = vsel %vm717, %v754, 0
        %763 = vmatpush.xpose.msra.mxu0 0.0
        %764 = vmatpush.xpose.msra.mxu0 0.0
        %765 = vmatpush.xpose.msra.mxu0 0.0
        %766 = vmatpush.xpose.msra.mxu0 0.0
        %767 = vmatpush.xpose.msra.mxu0 0.0
        %768 = vmatpush.xpose.msra.mxu0 0.0
        %769 = vmatpush.xpose.msra.mxu0 0.0
        %770 = vmatpush.xpose.msra.mxu0 0.0
        %771 = vmatpush.xpose.msra.mxu0 0.0
        %772 = vmatpush.xpose.msra.mxu0 0.0
        %773 = vmatpush.xpose.msra.mxu0 0.0
        %774 = vmatpush.xpose.msra.mxu0 0.0
        %775 = vmatpush.xpose.msra.mxu0 0.0
        %776 = vmatpush.xpose.msra.mxu0 0.0
        %777 = vmatpush.xpose.msra.mxu0 %v761
        %778 = vmatpush.xpose.msra.mxu0 %v759
        %779 = vmatmul.f32.gmra.mxu0 %v755
        %v780 = vpop.f32.mrf.mxu0
        %v781 = vadd.f32 0.0, %v780
        %782 = vmatmul.f32.gmra.mxu0 %v757
        %v783 = vpop.f32.mrf.mxu0
        %v784 = vadd.f32 0.0, %v783
        %785 = vdwg.mxu0
        %v786 = vmul.f32 %v744, 0.5
        %v787 = vmul.f32 %v747, 0.5
        %v788 = vmul.f32 %v781, 0.5
        %v789 = vmul.f32 %v784, 0.5
        %v790 = vsel %vm622, %v786, -inf
        %791 = vmax.xlane.f32.xlu0 %v790
        %v792 = vpop.xlane.xlu0 %791
        %v793 = vsel %vm622, %v787, -inf
        %794 = vmax.xlane.f32.xlu0 %v793
        %v795 = vpop.xlane.xlu0 %794
        %v796 = vsel %vm622, %v788, -inf
        %797 = vmax.xlane.f32.xlu0 %v796
        %v798 = vpop.xlane.xlu0 %797
        %v799 = vsel %vm622, %v789, -inf
        %800 = vmax.xlane.f32.xlu0 %v799
        %v801 = vpop.xlane.xlu0 %800
        %v802 = vsub.f32 %v786, %v792
        %v803 = vsub.f32 %v787, %v795
        %v804 = vsub.f32 %v788, %v798
        %v805 = vsub.f32 %v789, %v801
        %v806 = vmul.f32 %v802, 1.442695
        %v807 = vpow.pop %v806
        %v808 = vmul.f32 %v803, 1.442695
        %v809 = vpow.pop %v808
        %v810 = vmul.f32 %v804, 1.442695
        %v811 = vpow.pop %v810
        %v812 = vmul.f32 %v805, 1.442695
        %v813 = vpow.pop %v812
        %v814 = vsel %vm622, %v807, 0.0
        %815 = vadd.xlane.f32.xlu0 %v814
        %v816 = vpop.xlane.xlu0 %815
        %v817 = vsel %vm622, %v809, 0.0
        %818 = vadd.xlane.f32.xlu0 %v817
        %v819 = vpop.xlane.xlu0 %818
        %v820 = vsel %vm622, %v811, 0.0
        %821 = vadd.xlane.f32.xlu0 %v820
        %v822 = vpop.xlane.xlu0 %821
        %v823 = vsel %vm622, %v813, 0.0
        %824 = vadd.xlane.f32.xlu0 %v823
        %v825 = vpop.xlane.xlu0 %824
        %v826 = vrcp.pop %v816
        %v827 = vrcp.pop %v819
        %v828 = vrcp.pop %v822
        %v829 = vrcp.pop %v825
        %v830 = vmul.f32 %v807, %v826
        %v831 = vmul.f32 %v809, %v827
        %v832 = vmul.f32 %v811, %v828
        %v833 = vmul.f32 %v813, %v829
        %834 = vrot.lane.b32.xlu0 %v700, 96
        %v835 = vpop.permute.xlu0 %834
        %836 = vrot.lane.b32.xlu0 %v703, 96
        %v837 = vpop.permute.xlu0 %836
        %v841 = vsel %vm622, %v830, 0
        %v844 = vsel %vm622, %v831, 0
        %846 = vmatpush.msra.mxu0 0.0
        %847 = vmatpush.msra.mxu0 0.0
        %848 = vmatpush.msra.mxu0 0.0
        %849 = vmatpush.msra.mxu0 0.0
        %850 = vmatpush.msra.mxu0 0.0
        %851 = vmatpush.msra.mxu0 0.0
        %852 = vmatpush.msra.mxu0 0.0
        %853 = vmatpush.msra.mxu0 0.0
        %854 = vmatpush.msra.mxu0 0.0
        %855 = vmatpush.msra.mxu0 0.0
        %856 = vmatpush.msra.mxu0 0.0
        %857 = vmatpush.msra.mxu0 0.0
        %858 = vmatpush.msra.mxu0 0.0
        %859 = vmatpush.msra.mxu0 0.0
        %860 = vmatpush.msra.mxu0 %v837
        %861 = vmatpush.msra.mxu0 %v835
        %862 = vmatmul.f32.gmra.mxu0 %v841
        %v863 = vpop.f32.mrf.mxu0
        %v864 = vadd.f32 0.0, %v863
        %865 = vmatmul.f32.gmra.mxu0 %v844
        %v866 = vpop.f32.mrf.mxu0
        %v867 = vadd.f32 0.0, %v866
        %868 = vdwg.mxu0
        %869 = vrot.lane.b32.xlu0 %v706, 96
        %v870 = vpop.permute.xlu0 %869
        %871 = vrot.lane.b32.xlu0 %v709, 96
        %v872 = vpop.permute.xlu0 %871
        %v876 = vsel %vm622, %v832, 0
        %v879 = vsel %vm622, %v833, 0
        %881 = vmatpush.msra.mxu0 0.0
        %882 = vmatpush.msra.mxu0 0.0
        %883 = vmatpush.msra.mxu0 0.0
        %884 = vmatpush.msra.mxu0 0.0
        %885 = vmatpush.msra.mxu0 0.0
        %886 = vmatpush.msra.mxu0 0.0
        %887 = vmatpush.msra.mxu0 0.0
        %888 = vmatpush.msra.mxu0 0.0
        %889 = vmatpush.msra.mxu0 0.0
        %890 = vmatpush.msra.mxu0 0.0
        %891 = vmatpush.msra.mxu0 0.0
        %892 = vmatpush.msra.mxu0 0.0
        %893 = vmatpush.msra.mxu0 0.0
        %894 = vmatpush.msra.mxu0 0.0
        %895 = vmatpush.msra.mxu0 %v872
        %896 = vmatpush.msra.mxu0 %v870
        %897 = vmatmul.f32.gmra.mxu0 %v876
        %v898 = vpop.f32.mrf.mxu0
        %v899 = vadd.f32 0.0, %v898
        %900 = vmatmul.f32.gmra.mxu0 %v879
        %v901 = vpop.f32.mrf.mxu0
        %v902 = vadd.f32 0.0, %v901
        %903 = vdwg.mxu0
        %904 = vst.msk [vmem:[#allocation2] sm:$0xff] %vm717, %v864
        %905 = vst.msk [vmem:[#allocation2 + $0x8] sm:$0xff] %vm717, %v867
        %906 = vst.msk [vmem:[#allocation2 + $0x10] sm:$0xff] %vm717, %v899
        %907 = vst.msk [vmem:[#allocation2 + $0x18] sm:$0xff] %vm717, %v902
        %908 = vrot.lane.b32.xlu0 %v700, 124
        %v909 = vpop.permute.xlu0 %908
        %910 = vrot.lane.b32.xlu0 %v703, 124
        %v911 = vpop.permute.xlu0 %910
        %912 = vrot.lane.b32.xlu0 %v700, 108
        %v913 = vpop.permute.xlu0 %912
        %914 = vrot.lane.b32.xlu0 %v703, 108
        %v915 = vpop.permute.xlu0 %914
        %v916 = vsel %vm717, %v909, 0
        %v918 = vsel %vm717, %v911, 0
        %v920 = vsel %vm717, %v913, 0
        %v922 = vsel %vm717, %v915, 0
        %924 = vmatpush.xpose.msra.mxu0 0.0
        %925 = vmatpush.xpose.msra.mxu0 0.0
        %926 = vmatpush.xpose.msra.mxu0 0.0
        %927 = vmatpush.xpose.msra.mxu0 0.0
        %928 = vmatpush.xpose.msra.mxu0 0.0
        %929 = vmatpush.xpose.msra.mxu0 0.0
        %930 = vmatpush.xpose.msra.mxu0 0.0
        %931 = vmatpush.xpose.msra.mxu0 0.0
        %932 = vmatpush.xpose.msra.mxu0 0.0
        %933 = vmatpush.xpose.msra.mxu0 0.0
        %934 = vmatpush.xpose.msra.mxu0 0.0
        %935 = vmatpush.xpose.msra.mxu0 0.0
        %936 = vmatpush.xpose.msra.mxu0 0.0
        %937 = vmatpush.xpose.msra.mxu0 0.0
        %938 = vmatpush.xpose.msra.mxu0 %v922
        %939 = vmatpush.xpose.msra.mxu0 %v920
        %940 = vmatmul.f32.gmra.mxu0 %v916
        %v941 = vpop.f32.mrf.mxu0
        %v942 = vadd.f32 0.0, %v941
        %943 = vmatmul.f32.gmra.mxu0 %v918
        %v944 = vpop.f32.mrf.mxu0
        %v945 = vadd.f32 0.0, %v944
        %946 = vdwg.mxu0
        %947 = vrot.lane.b32.xlu0 %v706, 124
        %v948 = vpop.permute.xlu0 %947
        %949 = vrot.lane.b32.xlu0 %v709, 124
        %v950 = vpop.permute.xlu0 %949
        %951 = vrot.lane.b32.xlu0 %v706, 108
        %v952 = vpop.permute.xlu0 %951
        %953 = vrot.lane.b32.xlu0 %v709, 108
        %v954 = vpop.permute.xlu0 %953
        %v955 = vsel %vm717, %v948, 0
        %v957 = vsel %vm717, %v950, 0
        %v959 = vsel %vm717, %v952, 0
        %v961 = vsel %vm717, %v954, 0
        %963 = vmatpush.xpose.msra.mxu0 0.0
        %964 = vmatpush.xpose.msra.mxu0 0.0
        %965 = vmatpush.xpose.msra.mxu0 0.0
        %966 = vmatpush.xpose.msra.mxu0 0.0
        %967 = vmatpush.xpose.msra.mxu0 0.0
        %968 = vmatpush.xpose.msra.mxu0 0.0
        %969 = vmatpush.xpose.msra.mxu0 0.0
        %970 = vmatpush.xpose.msra.mxu0 0.0
        %971 = vmatpush.xpose.msra.mxu0 0.0
        %972 = vmatpush.xpose.msra.mxu0 0.0
        %973 = vmatpush.xpose.msra.mxu0 0.0
        %974 = vmatpush.xpose.msra.mxu0 0.0
        %975 = vmatpush.xpose.msra.mxu0 0.0
        %976 = vmatpush.xpose.msra.mxu0 0.0
        %977 = vmatpush.xpose.msra.mxu0 %v961
        %978 = vmatpush.xpose.msra.mxu0 %v959
        %979 = vmatmul.f32.gmra.mxu0 %v955
        %v980 = vpop.f32.mrf.mxu0
        %v981 = vadd.f32 0.0, %v980
        %982 = vmatmul.f32.gmra.mxu0 %v957
        %v983 = vpop.f32.mrf.mxu0
        %v984 = vadd.f32 0.0, %v983
        %985 = vdwg.mxu0
        %v986 = vmul.f32 %v942, 0.5
        %v987 = vmul.f32 %v945, 0.5
        %v988 = vmul.f32 %v981, 0.5
        %v989 = vmul.f32 %v984, 0.5
        %v990 = vsel %vm622, %v986, -inf
        %991 = vmax.xlane.f32.xlu0 %v990
        %v992 = vpop.xlane.xlu0 %991
        %v993 = vsel %vm622, %v987, -inf
        %994 = vmax.xlane.f32.xlu0 %v993
        %v995 = vpop.xlane.xlu0 %994
        %v996 = vsel %vm622, %v988, -inf
        %997 = vmax.xlane.f32.xlu0 %v996
        %v998 = vpop.xlane.xlu0 %997
        %v999 = vsel %vm622, %v989, -inf
        %1000 = vmax.xlane.f32.xlu0 %v999
        %v1001 = vpop.xlane.xlu0 %1000
        %v1002 = vsub.f32 %v986, %v992
        %v1003 = vsub.f32 %v987, %v995
        %v1004 = vsub.f32 %v988, %v998
        %v1005 = vsub.f32 %v989, %v1001
        %v1006 = vmul.f32 %v1002, 1.442695
        %v1007 = vpow.pop %v1006
        %v1008 = vmul.f32 %v1003, 1.442695
        %v1009 = vpow.pop %v1008
        %v1010 = vmul.f32 %v1004, 1.442695
        %v1011 = vpow.pop %v1010
        %v1012 = vmul.f32 %v1005, 1.442695
        %v1013 = vpow.pop %v1012
        %v1014 = vsel %vm622, %v1007, 0.0
        %1015 = vadd.xlane.f32.xlu0 %v1014
        %v1016 = vpop.xlane.xlu0 %1015
        %v1017 = vsel %vm622, %v1009, 0.0
        %1018 = vadd.xlane.f32.xlu0 %v1017
        %v1019 = vpop.xlane.xlu0 %1018
        %v1020 = vsel %vm622, %v1011, 0.0
        %1021 = vadd.xlane.f32.xlu0 %v1020
        %v1022 = vpop.xlane.xlu0 %1021
        %v1023 = vsel %vm622, %v1013, 0.0
        %1024 = vadd.xlane.f32.xlu0 %v1023
        %v1025 = vpop.xlane.xlu0 %1024
        %v1026 = vrcp.pop %v1016
        %v1027 = vrcp.pop %v1019
        %v1028 = vrcp.pop %v1022
        %v1029 = vrcp.pop %v1025
        %v1030 = vmul.f32 %v1007, %v1026
        %v1031 = vmul.f32 %v1009, %v1027
        %v1032 = vmul.f32 %v1011, %v1028
        %v1033 = vmul.f32 %v1013, %v1029
        %1034 = vrot.lane.b32.xlu0 %v700, 92
        %v1035 = vpop.permute.xlu0 %1034
        %1036 = vrot.lane.b32.xlu0 %v703, 92
        %v1037 = vpop.permute.xlu0 %1036
        %v1041 = vsel %vm622, %v1030, 0
        %v1044 = vsel %vm622, %v1031, 0
        %1046 = vmatpush.msra.mxu0 0.0
        %1047 = vmatpush.msra.mxu0 0.0
        %1048 = vmatpush.msra.mxu0 0.0
        %1049 = vmatpush.msra.mxu0 0.0
        %1050 = vmatpush.msra.mxu0 0.0
        %1051 = vmatpush.msra.mxu0 0.0
        %1052 = vmatpush.msra.mxu0 0.0
        %1053 = vmatpush.msra.mxu0 0.0
        %1054 = vmatpush.msra.mxu0 0.0
        %1055 = vmatpush.msra.mxu0 0.0
        %1056 = vmatpush.msra.mxu0 0.0
        %1057 = vmatpush.msra.mxu0 0.0
        %1058 = vmatpush.msra.mxu0 0.0
        %1059 = vmatpush.msra.mxu0 0.0
        %1060 = vmatpush.msra.mxu0 %v1037
        %1061 = vmatpush.msra.mxu0 %v1035
        %1062 = vmatmul.f32.gmra.mxu0 %v1041
        %v1063 = vpop.f32.mrf.mxu0
        %v1064 = vadd.f32 0.0, %v1063
        %1065 = vmatmul.f32.gmra.mxu0 %v1044
        %v1066 = vpop.f32.mrf.mxu0
        %v1067 = vadd.f32 0.0, %v1066
        %1068 = vdwg.mxu0
        %1069 = vrot.lane.b32.xlu0 %v706, 92
        %v1070 = vpop.permute.xlu0 %1069
        %1071 = vrot.lane.b32.xlu0 %v709, 92
        %v1072 = vpop.permute.xlu0 %1071
        %v1076 = vsel %vm622, %v1032, 0
        %v1079 = vsel %vm622, %v1033, 0
        %1081 = vmatpush.msra.mxu0 0.0
        %1082 = vmatpush.msra.mxu0 0.0
        %1083 = vmatpush.msra.mxu0 0.0
        %1084 = vmatpush.msra.mxu0 0.0
        %1085 = vmatpush.msra.mxu0 0.0
        %1086 = vmatpush.msra.mxu0 0.0
        %1087 = vmatpush.msra.mxu0 0.0
        %1088 = vmatpush.msra.mxu0 0.0
        %1089 = vmatpush.msra.mxu0 0.0
        %1090 = vmatpush.msra.mxu0 0.0
        %1091 = vmatpush.msra.mxu0 0.0
        %1092 = vmatpush.msra.mxu0 0.0
        %1093 = vmatpush.msra.mxu0 0.0
        %1094 = vmatpush.msra.mxu0 0.0
        %1095 = vmatpush.msra.mxu0 %v1072
        %1096 = vmatpush.msra.mxu0 %v1070
        %1097 = vmatmul.f32.gmra.mxu0 %v1076
        %v1098 = vpop.f32.mrf.mxu0
        %v1099 = vadd.f32 0.0, %v1098
        %1100 = vmatmul.f32.gmra.mxu0 %v1079
        %v1101 = vpop.f32.mrf.mxu0
        %v1102 = vadd.f32 0.0, %v1101
        %1103 = vdwg.mxu0
        %1108 = vrot.lane.b32.xlu0 %v1064, 4
        %v1109 = vpop.permute.xlu0 %1108
        %1110 = vrot.lane.b32.xlu0 %v1067, 4
        %v1111 = vpop.permute.xlu0 %1110
        %1112 = vrot.lane.b32.xlu0 %v1099, 4
        %v1113 = vpop.permute.xlu0 %1112
        %1114 = vrot.lane.b32.xlu0 %v1102, 4
        %v1115 = vpop.permute.xlu0 %1114
        %vm1120 = vcmask 64544
        %1121 = vst.msk [vmem:[#allocation2] sm:$0xff] %vm1120, %v1109
        %1122 = vst.msk [vmem:[#allocation2 + $0x8] sm:$0xff] %vm1120, %v1111
        %1123 = vst.msk [vmem:[#allocation2 + $0x10] sm:$0xff] %vm1120, %v1113
        %1124 = vst.msk [vmem:[#allocation2 + $0x18] sm:$0xff] %vm1120, %v1115
        %1125 = vrot.lane.b32.xlu0 %v700, 120
        %v1126 = vpop.permute.xlu0 %1125
        %1127 = vrot.lane.b32.xlu0 %v703, 120
        %v1128 = vpop.permute.xlu0 %1127
        %1129 = vrot.lane.b32.xlu0 %v700, 104
        %v1130 = vpop.permute.xlu0 %1129
        %1131 = vrot.lane.b32.xlu0 %v703, 104
        %v1132 = vpop.permute.xlu0 %1131
        %v1133 = vsel %vm717, %v1126, 0
        %v1135 = vsel %vm717, %v1128, 0
        %v1137 = vsel %vm717, %v1130, 0
        %v1139 = vsel %vm717, %v1132, 0
        %1141 = vmatpush.xpose.msra.mxu0 0.0
        %1142 = vmatpush.xpose.msra.mxu0 0.0
        %1143 = vmatpush.xpose.msra.mxu0 0.0
        %1144 = vmatpush.xpose.msra.mxu0 0.0
        %1145 = vmatpush.xpose.msra.mxu0 0.0
        %1146 = vmatpush.xpose.msra.mxu0 0.0
        %1147 = vmatpush.xpose.msra.mxu0 0.0
        %1148 = vmatpush.xpose.msra.mxu0 0.0
        %1149 = vmatpush.xpose.msra.mxu0 0.0
        %1150 = vmatpush.xpose.msra.mxu0 0.0
        %1151 = vmatpush.xpose.msra.mxu0 0.0
        %1152 = vmatpush.xpose.msra.mxu0 0.0
        %1153 = vmatpush.xpose.msra.mxu0 0.0
        %1154 = vmatpush.xpose.msra.mxu0 0.0
        %1155 = vmatpush.xpose.msra.mxu0 %v1139
        %1156 = vmatpush.xpose.msra.mxu0 %v1137
        %1157 = vmatmul.f32.gmra.mxu0 %v1133
        %v1158 = vpop.f32.mrf.mxu0
        %v1159 = vadd.f32 0.0, %v1158
        %1160 = vmatmul.f32.gmra.mxu0 %v1135
        %v1161 = vpop.f32.mrf.mxu0
        %v1162 = vadd.f32 0.0, %v1161
        %1163 = vdwg.mxu0
        %1164 = vrot.lane.b32.xlu0 %v706, 120
        %v1165 = vpop.permute.xlu0 %1164
        %1166 = vrot.lane.b32.xlu0 %v709, 120
        %v1167 = vpop.permute.xlu0 %1166
        %1168 = vrot.lane.b32.xlu0 %v706, 104
        %v1169 = vpop.permute.xlu0 %1168
        %1170 = vrot.lane.b32.xlu0 %v709, 104
        %v1171 = vpop.permute.xlu0 %1170
        %v1172 = vsel %vm717, %v1165, 0
        %v1174 = vsel %vm717, %v1167, 0
        %v1176 = vsel %vm717, %v1169, 0
        %v1178 = vsel %vm717, %v1171, 0
        %1180 = vmatpush.xpose.msra.mxu0 0.0
        %1181 = vmatpush.xpose.msra.mxu0 0.0
        %1182 = vmatpush.xpose.msra.mxu0 0.0
        %1183 = vmatpush.xpose.msra.mxu0 0.0
        %1184 = vmatpush.xpose.msra.mxu0 0.0
        %1185 = vmatpush.xpose.msra.mxu0 0.0
        %1186 = vmatpush.xpose.msra.mxu0 0.0
        %1187 = vmatpush.xpose.msra.mxu0 0.0
        %1188 = vmatpush.xpose.msra.mxu0 0.0
        %1189 = vmatpush.xpose.msra.mxu0 0.0
        %1190 = vmatpush.xpose.msra.mxu0 0.0
        %1191 = vmatpush.xpose.msra.mxu0 0.0
        %1192 = vmatpush.xpose.msra.mxu0 0.0
        %1193 = vmatpush.xpose.msra.mxu0 0.0
        %1194 = vmatpush.xpose.msra.mxu0 %v1178
        %1195 = vmatpush.xpose.msra.mxu0 %v1176
        %1196 = vmatmul.f32.gmra.mxu0 %v1172
        %v1197 = vpop.f32.mrf.mxu0
        %v1198 = vadd.f32 0.0, %v1197
        %1199 = vmatmul.f32.gmra.mxu0 %v1174
        %v1200 = vpop.f32.mrf.mxu0
        %v1201 = vadd.f32 0.0, %v1200
        %1202 = vdwg.mxu0
        %v1203 = vmul.f32 %v1159, 0.5
        %v1204 = vmul.f32 %v1162, 0.5
        %v1205 = vmul.f32 %v1198, 0.5
        %v1206 = vmul.f32 %v1201, 0.5
        %v1207 = vsel %vm622, %v1203, -inf
        %1208 = vmax.xlane.f32.xlu0 %v1207
        %v1209 = vpop.xlane.xlu0 %1208
        %v1210 = vsel %vm622, %v1204, -inf
        %1211 = vmax.xlane.f32.xlu0 %v1210
        %v1212 = vpop.xlane.xlu0 %1211
        %v1213 = vsel %vm622, %v1205, -inf
        %1214 = vmax.xlane.f32.xlu0 %v1213
        %v1215 = vpop.xlane.xlu0 %1214
        %v1216 = vsel %vm622, %v1206, -inf
        %1217 = vmax.xlane.f32.xlu0 %v1216
        %v1218 = vpop.xlane.xlu0 %1217
        %v1219 = vsub.f32 %v1203, %v1209
        %v1220 = vsub.f32 %v1204, %v1212
        %v1221 = vsub.f32 %v1205, %v1215
        %v1222 = vsub.f32 %v1206, %v1218
        %v1223 = vmul.f32 %v1219, 1.442695
        %v1224 = vpow.pop %v1223
        %v1225 = vmul.f32 %v1220, 1.442695
        %v1226 = vpow.pop %v1225
        %v1227 = vmul.f32 %v1221, 1.442695
        %v1228 = vpow.pop %v1227
        %v1229 = vmul.f32 %v1222, 1.442695
        %v1230 = vpow.pop %v1229
        %v1231 = vsel %vm622, %v1224, 0.0
        %1232 = vadd.xlane.f32.xlu0 %v1231
        %v1233 = vpop.xlane.xlu0 %1232
        %v1234 = vsel %vm622, %v1226, 0.0
        %1235 = vadd.xlane.f32.xlu0 %v1234
        %v1236 = vpop.xlane.xlu0 %1235
        %v1237 = vsel %vm622, %v1228, 0.0
        %1238 = vadd.xlane.f32.xlu0 %v1237
        %v1239 = vpop.xlane.xlu0 %1238
        %v1240 = vsel %vm622, %v1230, 0.0
        %1241 = vadd.xlane.f32.xlu0 %v1240
        %v1242 = vpop.xlane.xlu0 %1241
        %v1243 = vrcp.pop %v1233
        %v1244 = vrcp.pop %v1236
        %v1245 = vrcp.pop %v1239
        %v1246 = vrcp.pop %v1242
        %v1247 = vmul.f32 %v1224, %v1243
        %v1248 = vmul.f32 %v1226, %v1244
        %v1249 = vmul.f32 %v1228, %v1245
        %v1250 = vmul.f32 %v1230, %v1246
        %1251 = vrot.lane.b32.xlu0 %v700, 88
        %v1252 = vpop.permute.xlu0 %1251
        %1253 = vrot.lane.b32.xlu0 %v703, 88
        %v1254 = vpop.permute.xlu0 %1253
        %v1258 = vsel %vm622, %v1247, 0
        %v1261 = vsel %vm622, %v1248, 0
        %1263 = vmatpush.msra.mxu0 0.0
        %1264 = vmatpush.msra.mxu0 0.0
        %1265 = vmatpush.msra.mxu0 0.0
        %1266 = vmatpush.msra.mxu0 0.0
        %1267 = vmatpush.msra.mxu0 0.0
        %1268 = vmatpush.msra.mxu0 0.0
        %1269 = vmatpush.msra.mxu0 0.0
        %1270 = vmatpush.msra.mxu0 0.0
        %1271 = vmatpush.msra.mxu0 0.0
        %1272 = vmatpush.msra.mxu0 0.0
        %1273 = vmatpush.msra.mxu0 0.0
        %1274 = vmatpush.msra.mxu0 0.0
        %1275 = vmatpush.msra.mxu0 0.0
        %1276 = vmatpush.msra.mxu0 0.0
        %1277 = vmatpush.msra.mxu0 %v1254
        %1278 = vmatpush.msra.mxu0 %v1252
        %1279 = vmatmul.f32.gmra.mxu0 %v1258
        %v1280 = vpop.f32.mrf.mxu0
        %v1281 = vadd.f32 0.0, %v1280
        %1282 = vmatmul.f32.gmra.mxu0 %v1261
        %v1283 = vpop.f32.mrf.mxu0
        %v1284 = vadd.f32 0.0, %v1283
        %1285 = vdwg.mxu0
        %1286 = vrot.lane.b32.xlu0 %v706, 88
        %v1287 = vpop.permute.xlu0 %1286
        %1288 = vrot.lane.b32.xlu0 %v709, 88
        %v1289 = vpop.permute.xlu0 %1288
        %v1293 = vsel %vm622, %v1249, 0
        %v1296 = vsel %vm622, %v1250, 0
        %1298 = vmatpush.msra.mxu0 0.0
        %1299 = vmatpush.msra.mxu0 0.0
        %1300 = vmatpush.msra.mxu0 0.0
        %1301 = vmatpush.msra.mxu0 0.0
        %1302 = vmatpush.msra.mxu0 0.0
        %1303 = vmatpush.msra.mxu0 0.0
        %1304 = vmatpush.msra.mxu0 0.0
        %1305 = vmatpush.msra.mxu0 0.0
        %1306 = vmatpush.msra.mxu0 0.0
        %1307 = vmatpush.msra.mxu0 0.0
        %1308 = vmatpush.msra.mxu0 0.0
        %1309 = vmatpush.msra.mxu0 0.0
        %1310 = vmatpush.msra.mxu0 0.0
        %1311 = vmatpush.msra.mxu0 0.0
        %1312 = vmatpush.msra.mxu0 %v1289
        %1313 = vmatpush.msra.mxu0 %v1287
        %1314 = vmatmul.f32.gmra.mxu0 %v1293
        %v1315 = vpop.f32.mrf.mxu0
        %v1316 = vadd.f32 0.0, %v1315
        %1317 = vmatmul.f32.gmra.mxu0 %v1296
        %v1318 = vpop.f32.mrf.mxu0
        %v1319 = vadd.f32 0.0, %v1318
        %1320 = vdwg.mxu0
        %1325 = vrot.lane.b32.xlu0 %v1281, 8
        %v1326 = vpop.permute.xlu0 %1325
        %1327 = vrot.lane.b32.xlu0 %v1284, 8
        %v1328 = vpop.permute.xlu0 %1327
        %1329 = vrot.lane.b32.xlu0 %v1316, 8
        %v1330 = vpop.permute.xlu0 %1329
        %1331 = vrot.lane.b32.xlu0 %v1319, 8
        %v1332 = vpop.permute.xlu0 %1331
        %vm1337 = vcmask 97344
        %1338 = vst.msk [vmem:[#allocation2] sm:$0xff] %vm1337, %v1326
        %1339 = vst.msk [vmem:[#allocation2 + $0x8] sm:$0xff] %vm1337, %v1328
        %1340 = vst.msk [vmem:[#allocation2 + $0x10] sm:$0xff] %vm1337, %v1330
        %1341 = vst.msk [vmem:[#allocation2 + $0x18] sm:$0xff] %vm1337, %v1332
        %1342 = vrot.lane.b32.xlu0 %v700, 116
        %v1343 = vpop.permute.xlu0 %1342
        %1344 = vrot.lane.b32.xlu0 %v703, 116
        %v1345 = vpop.permute.xlu0 %1344
        %1346 = vrot.lane.b32.xlu0 %v700, 100
        %v1347 = vpop.permute.xlu0 %1346
        %1348 = vrot.lane.b32.xlu0 %v703, 100
        %v1349 = vpop.permute.xlu0 %1348
        %v1350 = vsel %vm717, %v1343, 0
        %v1352 = vsel %vm717, %v1345, 0
        %v1354 = vsel %vm717, %v1347, 0
        %v1356 = vsel %vm717, %v1349, 0
        %1358 = vmatpush.xpose.msra.mxu0 0.0
        %1359 = vmatpush.xpose.msra.mxu0 0.0
        %1360 = vmatpush.xpose.msra.mxu0 0.0
        %1361 = vmatpush.xpose.msra.mxu0 0.0
        %1362 = vmatpush.xpose.msra.mxu0 0.0
        %1363 = vmatpush.xpose.msra.mxu0 0.0
        %1364 = vmatpush.xpose.msra.mxu0 0.0
        %1365 = vmatpush.xpose.msra.mxu0 0.0
        %1366 = vmatpush.xpose.msra.mxu0 0.0
        %1367 = vmatpush.xpose.msra.mxu0 0.0
        %1368 = vmatpush.xpose.msra.mxu0 0.0
        %1369 = vmatpush.xpose.msra.mxu0 0.0
        %1370 = vmatpush.xpose.msra.mxu0 0.0
        %1371 = vmatpush.xpose.msra.mxu0 0.0
        %1372 = vmatpush.xpose.msra.mxu0 %v1356
        %1373 = vmatpush.xpose.msra.mxu0 %v1354
        %1374 = vmatmul.f32.gmra.mxu0 %v1350
        %v1375 = vpop.f32.mrf.mxu0
        %v1376 = vadd.f32 0.0, %v1375
        %1377 = vmatmul.f32.gmra.mxu0 %v1352
        %v1378 = vpop.f32.mrf.mxu0
        %v1379 = vadd.f32 0.0, %v1378
        %1380 = vdwg.mxu0
        %1381 = vrot.lane.b32.xlu0 %v706, 116
        %v1382 = vpop.permute.xlu0 %1381
        %1383 = vrot.lane.b32.xlu0 %v709, 116
        %v1384 = vpop.permute.xlu0 %1383
        %1385 = vrot.lane.b32.xlu0 %v706, 100
        %v1386 = vpop.permute.xlu0 %1385
        %1387 = vrot.lane.b32.xlu0 %v709, 100
        %v1388 = vpop.permute.xlu0 %1387
        %v1389 = vsel %vm717, %v1382, 0
        %v1391 = vsel %vm717, %v1384, 0
        %v1393 = vsel %vm717, %v1386, 0
        %v1395 = vsel %vm717, %v1388, 0
        %1397 = vmatpush.xpose.msra.mxu0 0.0
        %1398 = vmatpush.xpose.msra.mxu0 0.0
        %1399 = vmatpush.xpose.msra.mxu0 0.0
        %1400 = vmatpush.xpose.msra.mxu0 0.0
        %1401 = vmatpush.xpose.msra.mxu0 0.0
        %1402 = vmatpush.xpose.msra.mxu0 0.0
        %1403 = vmatpush.xpose.msra.mxu0 0.0
        %1404 = vmatpush.xpose.msra.mxu0 0.0
        %1405 = vmatpush.xpose.msra.mxu0 0.0
        %1406 = vmatpush.xpose.msra.mxu0 0.0
        %1407 = vmatpush.xpose.msra.mxu0 0.0
        %1408 = vmatpush.xpose.msra.mxu0 0.0
        %1409 = vmatpush.xpose.msra.mxu0 0.0
        %1410 = vmatpush.xpose.msra.mxu0 0.0
        %1411 = vmatpush.xpose.msra.mxu0 %v1395
        %1412 = vmatpush.xpose.msra.mxu0 %v1393
        %1413 = vmatmul.f32.gmra.mxu0 %v1389
        %v1414 = vpop.f32.mrf.mxu0
        %v1415 = vadd.f32 0.0, %v1414
        %1416 = vmatmul.f32.gmra.mxu0 %v1391
        %v1417 = vpop.f32.mrf.mxu0
        %v1418 = vadd.f32 0.0, %v1417
        %1419 = vdwg.mxu0
        %v1420 = vmul.f32 %v1376, 0.5
        %v1421 = vmul.f32 %v1379, 0.5
        %v1422 = vmul.f32 %v1415, 0.5
        %v1423 = vmul.f32 %v1418, 0.5
        %v1424 = vsel %vm622, %v1420, -inf
        %1425 = vmax.xlane.f32.xlu0 %v1424
        %v1426 = vpop.xlane.xlu0 %1425
        %v1427 = vsel %vm622, %v1421, -inf
        %1428 = vmax.xlane.f32.xlu0 %v1427
        %v1429 = vpop.xlane.xlu0 %1428
        %v1430 = vsel %vm622, %v1422, -inf
        %1431 = vmax.xlane.f32.xlu0 %v1430
        %v1432 = vpop.xlane.xlu0 %1431
        %v1433 = vsel %vm622, %v1423, -inf
        %1434 = vmax.xlane.f32.xlu0 %v1433
        %v1435 = vpop.xlane.xlu0 %1434
        %v1436 = vsub.f32 %v1420, %v1426
        %v1437 = vsub.f32 %v1421, %v1429
        %v1438 = vsub.f32 %v1422, %v1432
        %v1439 = vsub.f32 %v1423, %v1435
        %v1440 = vmul.f32 %v1436, 1.442695
        %v1441 = vpow.pop %v1440
        %v1442 = vmul.f32 %v1437, 1.442695
        %v1443 = vpow.pop %v1442
        %v1444 = vmul.f32 %v1438, 1.442695
        %v1445 = vpow.pop %v1444
        %v1446 = vmul.f32 %v1439, 1.442695
        %v1447 = vpow.pop %v1446
        %v1448 = vsel %vm622, %v1441, 0.0
        %1449 = vadd.xlane.f32.xlu0 %v1448
        %v1450 = vpop.xlane.xlu0 %1449
        %v1451 = vsel %vm622, %v1443, 0.0
        %1452 = vadd.xlane.f32.xlu0 %v1451
        %v1453 = vpop.xlane.xlu0 %1452
        %v1454 = vsel %vm622, %v1445, 0.0
        %1455 = vadd.xlane.f32.xlu0 %v1454
        %v1456 = vpop.xlane.xlu0 %1455
        %v1457 = vsel %vm622, %v1447, 0.0
        %1458 = vadd.xlane.f32.xlu0 %v1457
        %v1459 = vpop.xlane.xlu0 %1458
        %v1460 = vrcp.pop %v1450
        %v1461 = vrcp.pop %v1453
        %v1462 = vrcp.pop %v1456
        %v1463 = vrcp.pop %v1459
        %v1464 = vmul.f32 %v1441, %v1460
        %v1465 = vmul.f32 %v1443, %v1461
        %v1466 = vmul.f32 %v1445, %v1462
        %v1467 = vmul.f32 %v1447, %v1463
        %1468 = vrot.lane.b32.xlu0 %v700, 84
        %v1469 = vpop.permute.xlu0 %1468
        %1470 = vrot.lane.b32.xlu0 %v703, 84
        %v1471 = vpop.permute.xlu0 %1470
        %v1475 = vsel %vm622, %v1464, 0
        %v1478 = vsel %vm622, %v1465, 0
        %1480 = vmatpush.msra.mxu0 0.0
        %1481 = vmatpush.msra.mxu0 0.0
        %1482 = vmatpush.msra.mxu0 0.0
        %1483 = vmatpush.msra.mxu0 0.0
        %1484 = vmatpush.msra.mxu0 0.0
        %1485 = vmatpush.msra.mxu0 0.0
        %1486 = vmatpush.msra.mxu0 0.0
        %1487 = vmatpush.msra.mxu0 0.0
        %1488 = vmatpush.msra.mxu0 0.0
        %1489 = vmatpush.msra.mxu0 0.0
        %1490 = vmatpush.msra.mxu0 0.0
        %1491 = vmatpush.msra.mxu0 0.0
        %1492 = vmatpush.msra.mxu0 0.0
        %1493 = vmatpush.msra.mxu0 0.0
        %1494 = vmatpush.msra.mxu0 %v1471
        %1495 = vmatpush.msra.mxu0 %v1469
        %1496 = vmatmul.f32.gmra.mxu0 %v1475
        %v1497 = vpop.f32.mrf.mxu0
        %v1498 = vadd.f32 0.0, %v1497
        %1499 = vmatmul.f32.gmra.mxu0 %v1478
        %v1500 = vpop.f32.mrf.mxu0
        %v1501 = vadd.f32 0.0, %v1500
        %1502 = vdwg.mxu0
        %1503 = vrot.lane.b32.xlu0 %v706, 84
        %v1504 = vpop.permute.xlu0 %1503
        %1505 = vrot.lane.b32.xlu0 %v709, 84
        %v1506 = vpop.permute.xlu0 %1505
        %v1510 = vsel %vm622, %v1466, 0
        %v1513 = vsel %vm622, %v1467, 0
        %1515 = vmatpush.msra.mxu0 0.0
        %1516 = vmatpush.msra.mxu0 0.0
        %1517 = vmatpush.msra.mxu0 0.0
        %1518 = vmatpush.msra.mxu0 0.0
        %1519 = vmatpush.msra.mxu0 0.0
        %1520 = vmatpush.msra.mxu0 0.0
        %1521 = vmatpush.msra.mxu0 0.0
        %1522 = vmatpush.msra.mxu0 0.0
        %1523 = vmatpush.msra.mxu0 0.0
        %1524 = vmatpush.msra.mxu0 0.0
        %1525 = vmatpush.msra.mxu0 0.0
        %1526 = vmatpush.msra.mxu0 0.0
        %1527 = vmatpush.msra.mxu0 0.0
        %1528 = vmatpush.msra.mxu0 0.0
        %1529 = vmatpush.msra.mxu0 %v1506
        %1530 = vmatpush.msra.mxu0 %v1504
        %1531 = vmatmul.f32.gmra.mxu0 %v1510
        %v1532 = vpop.f32.mrf.mxu0
        %v1533 = vadd.f32 0.0, %v1532
        %1534 = vmatmul.f32.gmra.mxu0 %v1513
        %v1535 = vpop.f32.mrf.mxu0
        %v1536 = vadd.f32 0.0, %v1535
        %1537 = vdwg.mxu0
        %1542 = vrot.lane.b32.xlu0 %v1498, 12
        %v1543 = vpop.permute.xlu0 %1542
        %1544 = vrot.lane.b32.xlu0 %v1501, 12
        %v1545 = vpop.permute.xlu0 %1544
        %1546 = vrot.lane.b32.xlu0 %v1533, 12
        %v1547 = vpop.permute.xlu0 %1546
        %1548 = vrot.lane.b32.xlu0 %v1536, 12
        %v1549 = vpop.permute.xlu0 %1548
        %vm1554 = vcmask 130144
        %1555 = vst.msk [vmem:[#allocation2] sm:$0xff] %vm1554, %v1543
        %1556 = vst.msk [vmem:[#allocation2 + $0x8] sm:$0xff] %vm1554, %v1545
        %1557 = vst.msk [vmem:[#allocation2 + $0x10] sm:$0xff] %vm1554, %v1547
        %1558 = vst.msk [vmem:[#allocation2 + $0x18] sm:$0xff] %vm1554, %v1549
        %v1559 = vld [vmem:[#allocation2] sm:$0xff]
        %v1560 = vld [vmem:[#allocation2 + $0x8] sm:$0xff]
        %v1561 = vld [vmem:[#allocation2 + $0x10] sm:$0xff]
        %v1562 = vld [vmem:[#allocation2 + $0x18] sm:$0xff]
        %v1563 = vld [vmem:[%s7] sm:$0xff]
        %v1564 = vld [vmem:[%s7 + $0x8] sm:$0xff]
        %v1565 = vld [vmem:[%s8] sm:$0x1]
        %v1567 = vperm.slane %v1565, 0
        %v1570 = vsel %vm622, %v1559, 0
        %v1573 = vsel %vm622, %v1560, 0
        %v1576 = vsel %vm622, %v1561, 0
        %v1579 = vsel %vm622, %v1562, 0
        %1581 = vmatpush.msra.mxu0 0.0
        %1582 = vmatpush.msra.mxu0 0.0
        %1583 = vmatpush.msra.mxu0 0.0
        %1584 = vmatpush.msra.mxu0 0.0
        %1585 = vmatpush.msra.mxu0 0.0
        %1586 = vmatpush.msra.mxu0 0.0
        %1587 = vmatpush.msra.mxu0 0.0
        %1588 = vmatpush.msra.mxu0 0.0
        %1589 = vmatpush.msra.mxu0 0.0
        %1590 = vmatpush.msra.mxu0 0.0
        %1591 = vmatpush.msra.mxu0 0.0
        %1592 = vmatpush.msra.mxu0 0.0
        %1593 = vmatpush.msra.mxu0 0.0
        %1594 = vmatpush.msra.mxu0 0.0
        %1595 = vmatpush.msra.mxu0 %v1564
        %1596 = vmatpush.msra.mxu0 %v1563
        %1597 = vmatmul.f32.gmra.mxu0 %v1570
        %v1598 = vpop.f32.mrf.mxu0
        %v1599 = vadd.f32 %v1567, %v1598
        %1600 = vmatmul.f32.gmra.mxu0 %v1573
        %v1601 = vpop.f32.mrf.mxu0
        %v1602 = vadd.f32 %v1567, %v1601
        %1603 = vmatmul.f32.gmra.mxu0 %v1576
        %v1604 = vpop.f32.mrf.mxu0
        %v1605 = vadd.f32 %v1567, %v1604
        %1606 = vmatmul.f32.gmra.mxu0 %v1579
        %v1607 = vpop.f32.mrf.mxu0
        %v1608 = vadd.f32 %v1567, %v1607
        %1609 = vdwg.mxu0
        %v1610 = vadd.f32 %v653, %v1599
        %v1611 = vadd.f32 %v656, %v1602
        %v1612 = vadd.f32 %v659, %v1605
        %v1613 = vadd.f32 %v662, %v1608
        %v1614 = vsel %vm622, %v1610, 0.0
        %1615 = vadd.xlane.f32.xlu0 %v1614
        %v1616 = vpop.xlane.xlu0 %1615
        %v1617 = vsel %vm622, %v1611, 0.0
        %1618 = vadd.xlane.f32.xlu0 %v1617
        %v1619 = vpop.xlane.xlu0 %1618
        %v1620 = vsel %vm622, %v1612, 0.0
        %1621 = vadd.xlane.f32.xlu0 %v1620
        %v1622 = vpop.xlane.xlu0 %1621
        %v1623 = vsel %vm622, %v1613, 0.0
        %1624 = vadd.xlane.f32.xlu0 %v1623
        %v1625 = vpop.xlane.xlu0 %1624
        %v1626 = vrcp.pop 16.0
        %v1627 = vmul.f32 16.0, %v1626
        %v1628 = vsub.f32 1.0, %v1627
        %v1629 = vmul.f32 %v1626, %v1628
        %v1630 = vadd.f32 %v1626, %v1629
        %vm1631 = vweird.f32 %v1626
        %v1632 = vsel %vm1631, %v1626, %v1630
        %v1633 = vmul.f32 %v1616, %v1632
        %v1634 = vmul.f32 %v1619, %v1632
        %v1635 = vmul.f32 %v1622, %v1632
        %v1636 = vmul.f32 %v1625, %v1632
        %v1637 = vsub.f32 %v1610, %v1633
        %v1638 = vsub.f32 %v1611, %v1634
        %v1639 = vsub.f32 %v1612, %v1635
        %v1640 = vsub.f32 %v1613, %v1636
        %v1641 = vmul.f32 %v1637, %v1637
        %v1642 = vmul.f32 %v1638, %v1638
        %v1643 = vmul.f32 %v1639, %v1639
        %v1644 = vmul.f32 %v1640, %v1640
        %v1645 = vsel %vm622, %v1641, 0.0
        %1646 = vadd.xlane.f32.xlu0 %v1645
        %v1647 = vpop.xlane.xlu0 %1646
        %v1648 = vsel %vm622, %v1642, 0.0
        %1649 = vadd.xlane.f32.xlu0 %v1648
        %v1650 = vpop.xlane.xlu0 %1649
        %v1651 = vsel %vm622, %v1643, 0.0
        %1652 = vadd.xlane.f32.xlu0 %v1651
        %v1653 = vpop.xlane.xlu0 %1652
        %v1654 = vsel %vm622, %v1644, 0.0
        %1655 = vadd.xlane.f32.xlu0 %v1654
        %v1656 = vpop.xlane.xlu0 %1655
        %v1657 = vmul.f32 %v1647, %v1632
        %v1658 = vmul.f32 %v1650, %v1632
        %v1659 = vmul.f32 %v1653, %v1632
        %v1660 = vmul.f32 %v1656, %v1632
        %v1661 = vadd.f32 %v1657, 1e-05
        %v1662 = vadd.f32 %v1658, 1e-05
        %v1663 = vadd.f32 %v1659, 1e-05
        %v1664 = vadd.f32 %v1660, 1e-05
        %v1665 = vrsqrt.pop %v1661
        %v1666 = vmul.f32 %v1665, %v1661
        %v1667 = vmul.f32 %v1666, %v1665
        %v1668 = vmul.f32 0.5, %v1667
        %v1669 = vsub.f32 1.5, %v1668
        %v1670 = vmul.f32 %v1665, %v1669
        %vm1671 = vweird.f32 %v1661
        %vm1672 = vweird.f32 %v1665
        %vm1673 = vmor %vm1671, %vm1672
        %v1674 = vsel %vm1673, %v1665, %v1670
        %v1675 = vrsqrt.pop %v1662
        %v1676 = vmul.f32 %v1675, %v1662
        %v1677 = vmul.f32 %v1676, %v1675
        %v1678 = vmul.f32 0.5, %v1677
        %v1679 = vsub.f32 1.5, %v1678
        %v1680 = vmul.f32 %v1675, %v1679
        %vm1681 = vweird.f32 %v1662
        %vm1682 = vweird.f32 %v1675
        %vm1683 = vmor %vm1681, %vm1682
        %v1684 = vsel %vm1683, %v1675, %v1680
        %v1685 = vrsqrt.pop %v1663
        %v1686 = vmul.f32 %v1685, %v1663
        %v1687 = vmul.f32 %v1686, %v1685
        %v1688 = vmul.f32 0.5, %v1687
        %v1689 = vsub.f32 1.5, %v1688
        %v1690 = vmul.f32 %v1685, %v1689
        %vm1691 = vweird.f32 %v1663
        %vm1692 = vweird.f32 %v1685
        %vm1693 = vmor %vm1691, %vm1692
        %v1694 = vsel %vm1693, %v1685, %v1690
        %v1695 = vrsqrt.pop %v1664
        %v1696 = vmul.f32 %v1695, %v1664
        %v1697 = vmul.f32 %v1696, %v1695
        %v1698 = vmul.f32 0.5, %v1697
        %v1699 = vsub.f32 1.5, %v1698
        %v1700 = vmul.f32 %v1695, %v1699
        %vm1701 = vweird.f32 %v1664
        %vm1702 = vweird.f32 %v1695
        %vm1703 = vmor %vm1701, %vm1702
        %v1704 = vsel %vm1703, %v1695, %v1700
        %v1705 = vmul.f32 %v1637, %v1674
        %v1706 = vmul.f32 %v1638, %v1684
        %v1707 = vmul.f32 %v1639, %v1694
        %v1708 = vmul.f32 %v1640, %v1704
        %v1709 = vld [vmem:[%s9] sm:$0x1]
        %v1711 = vperm.slane %v1709, 0
        %v1713 = vmul.f32 %v1705, %v1711
        %v1714 = vmul.f32 %v1706, %v1711
        %v1715 = vmul.f32 %v1707, %v1711
        %v1716 = vmul.f32 %v1708, %v1711
        %v1717 = vld [vmem:[%s10] sm:$0x1]
        %v1719 = vperm.slane %v1717, 0
        %v1721 = vadd.f32 %v1713, %v1719
        %v1722 = vadd.f32 %v1714, %v1719
        %v1723 = vadd.f32 %v1715, %v1719
        %v1724 = vadd.f32 %v1716, %v1719
        %v1725 = vld [vmem:[%s11] sm:$0xff]
        %v1726 = vld [vmem:[%s11 + $0x8] sm:$0xff]
        %v1727 = vld [vmem:[%s12] sm:$0x1]
        %v1729 = vperm.slane %v1727, 0
        %v1732 = vsel %vm622, %v1721, 0
        %v1735 = vsel %vm622, %v1722, 0
        %v1738 = vsel %vm622, %v1723, 0
        %v1741 = vsel %vm622, %v1724, 0
        %1743 = vmatpush.msra.mxu0 0.0
        %1744 = vmatpush.msra.mxu0 0.0
        %1745 = vmatpush.msra.mxu0 0.0
        %1746 = vmatpush.msra.mxu0 0.0
        %1747 = vmatpush.msra.mxu0 0.0
        %1748 = vmatpush.msra.mxu0 0.0
        %1749 = vmatpush.msra.mxu0 0.0
        %1750 = vmatpush.msra.mxu0 0.0
        %1751 = vmatpush.msra.mxu0 0.0
        %1752 = vmatpush.msra.mxu0 0.0
        %1753 = vmatpush.msra.mxu0 0.0
        %1754 = vmatpush.msra.mxu0 0.0
        %1755 = vmatpush.msra.mxu0 0.0
        %1756 = vmatpush.msra.mxu0 0.0
        %1757 = vmatpush.msra.mxu0 %v1726
        %1758 = vmatpush.msra.mxu0 %v1725
        %1759 = vmatmul.f32.gmra.mxu0 %v1732
        %v1760 = vpop.f32.mrf.mxu0
        %v1761 = vadd.f32 %v1729, %v1760
        %1762 = vmatmul.f32.gmra.mxu0 %v1735
        %v1763 = vpop.f32.mrf.mxu0
        %v1764 = vadd.f32 %v1729, %v1763
        %1765 = vmatmul.f32.gmra.mxu0 %v1738
        %v1766 = vpop.f32.mrf.mxu0
        %v1767 = vadd.f32 %v1729, %v1766
        %1768 = vmatmul.f32.gmra.mxu0 %v1741
        %v1769 = vpop.f32.mrf.mxu0
        %v1770 = vadd.f32 %v1729, %v1769
        %1771 = vdwg.mxu0
        %v1772 = vmax.f32 %v1761, 0.0
        %v1773 = vmax.f32 %v1764, 0.0
        %v1774 = vmax.f32 %v1767, 0.0
        %v1775 = vmax.f32 %v1770, 0.0
        %v1776 = vld [vmem:[%s13] sm:$0xff]
        %v1777 = vld [vmem:[%s13 + $0x8] sm:$0xff]
        %v1778 = vld [vmem:[%s13 + $0x10] sm:$0xff]
        %v1779 = vld [vmem:[%s13 + $0x18] sm:$0xff]
        %v1780 = vld [vmem:[%s14] sm:$0x1]
        %v1782 = vperm.slane %v1780, 0
        %vm1784 = vcmask 261120
        %v1786 = vsel %vm1784, %v1772, 0
        %v1789 = vsel %vm1784, %v1773, 0
        %v1792 = vsel %vm1784, %v1774, 0
        %v1795 = vsel %vm1784, %v1775, 0
        %1797 = vmatpush.msra.mxu0 0.0
        %1798 = vmatpush.msra.mxu0 0.0
        %1799 = vmatpush.msra.mxu0 0.0
        %1800 = vmatpush.msra.mxu0 0.0
        %1801 = vmatpush.msra.mxu0 0.0
        %1802 = vmatpush.msra.mxu0 0.0
        %1803 = vmatpush.msra.mxu0 0.0
        %1804 = vmatpush.msra.mxu0 0.0
        %1805 = vmatpush.msra.mxu0 0.0
        %1806 = vmatpush.msra.mxu0 0.0
        %1807 = vmatpush.msra.mxu0 0.0
        %1808 = vmatpush.msra.mxu0 0.0
        %1809 = vmatpush.msra.mxu0 %v1779
        %1810 = vmatpush.msra.mxu0 %v1778
        %1811 = vmatpush.msra.mxu0 %v1777
        %1812 = vmatpush.msra.mxu0 %v1776
        %1813 = vmatmul.f32.gmra.mxu0 %v1786
        %v1814 = vpop.f32.mrf.mxu0
        %v1815 = vadd.f32 %v1782, %v1814
        %1816 = vmatmul.f32.gmra.mxu0 %v1789
        %v1817 = vpop.f32.mrf.mxu0
        %v1818 = vadd.f32 %v1782, %v1817
        %1819 = vmatmul.f32.gmra.mxu0 %v1792
        %v1820 = vpop.f32.mrf.mxu0
        %v1821 = vadd.f32 %v1782, %v1820
        %1822 = vmatmul.f32.gmra.mxu0 %v1795
        %v1823 = vpop.f32.mrf.mxu0
        %v1824 = vadd.f32 %v1782, %v1823
        %1825 = vdwg.mxu0
        %v1826 = vadd.f32 %v1721, %v1815
        %v1827 = vadd.f32 %v1722, %v1818
        %v1828 = vadd.f32 %v1723, %v1821
        %v1829 = vadd.f32 %v1724, %v1824
        %v1830 = vsel %vm622, %v1826, 0.0
        %1831 = vadd.xlane.f32.xlu0 %v1830
        %v1832 = vpop.xlane.xlu0 %1831
        %v1833 = vsel %vm622, %v1827, 0.0
        %1834 = vadd.xlane.f32.xlu0 %v1833
        %v1835 = vpop.xlane.xlu0 %1834
        %v1836 = vsel %vm622, %v1828, 0.0
        %1837 = vadd.xlane.f32.xlu0 %v1836
        %v1838 = vpop.xlane.xlu0 %1837
        %v1839 = vsel %vm622, %v1829, 0.0
        %1840 = vadd.xlane.f32.xlu0 %v1839
        %v1841 = vpop.xlane.xlu0 %1840
        %v1842 = vmul.f32 %v1832, %v1632
        %v1843 = vmul.f32 %v1835, %v1632
        %v1844 = vmul.f32 %v1838, %v1632
        %v1845 = vmul.f32 %v1841, %v1632
        %v1846 = vsub.f32 %v1826, %v1842
        %v1847 = vsub.f32 %v1827, %v1843
        %v1848 = vsub.f32 %v1828, %v1844
        %v1849 = vsub.f32 %v1829, %v1845
        %v1850 = vmul.f32 %v1846, %v1846
        %v1851 = vmul.f32 %v1847, %v1847
        %v1852 = vmul.f32 %v1848, %v1848
        %v1853 = vmul.f32 %v1849, %v1849
        %v1854 = vsel %vm622, %v1850, 0.0
        %1855 = vadd.xlane.f32.xlu0 %v1854
        %v1856 = vpop.xlane.xlu0 %1855
        %v1857 = vsel %vm622, %v1851, 0.0
        %1858 = vadd.xlane.f32.xlu0 %v1857
        %v1859 = vpop.xlane.xlu0 %1858
        %v1860 = vsel %vm622, %v1852, 0.0
        %1861 = vadd.xlane.f32.xlu0 %v1860
        %v1862 = vpop.xlane.xlu0 %1861
        %v1863 = vsel %vm622, %v1853, 0.0
        %1864 = vadd.xlane.f32.xlu0 %v1863
        %v1865 = vpop.xlane.xlu0 %1864
        %v1866 = vmul.f32 %v1856, %v1632
        %v1867 = vmul.f32 %v1859, %v1632
        %v1868 = vmul.f32 %v1862, %v1632
        %v1869 = vmul.f32 %v1865, %v1632
        %v1870 = vadd.f32 %v1866, 1e-05
        %v1871 = vadd.f32 %v1867, 1e-05
        %v1872 = vadd.f32 %v1868, 1e-05
        %v1873 = vadd.f32 %v1869, 1e-05
        %v1874 = vrsqrt.pop %v1870
        %v1875 = vmul.f32 %v1874, %v1870
        %v1876 = vmul.f32 %v1875, %v1874
        %v1877 = vmul.f32 0.5, %v1876
        %v1878 = vsub.f32 1.5, %v1877
        %v1879 = vmul.f32 %v1874, %v1878
        %vm1880 = vweird.f32 %v1870
        %vm1881 = vweird.f32 %v1874
        %vm1882 = vmor %vm1880, %vm1881
        %v1883 = vsel %vm1882, %v1874, %v1879
        %v1884 = vrsqrt.pop %v1871
        %v1885 = vmul.f32 %v1884, %v1871
        %v1886 = vmul.f32 %v1885, %v1884
        %v1887 = vmul.f32 0.5, %v1886
        %v1888 = vsub.f32 1.5, %v1887
        %v1889 = vmul.f32 %v1884, %v1888
        %vm1890 = vweird.f32 %v1871
        %vm1891 = vweird.f32 %v1884
        %vm1892 = vmor %vm1890, %vm1891
        %v1893 = vsel %vm1892, %v1884, %v1889
        %v1894 = vrsqrt.pop %v1872
        %v1895 = vmul.f32 %v1894, %v1872
        %v1896 = vmul.f32 %v1895, %v1894
        %v1897 = vmul.f32 0.5, %v1896
        %v1898 = vsub.f32 1.5, %v1897
        %v1899 = vmul.f32 %v1894, %v1898
        %vm1900 = vweird.f32 %v1872
        %vm1901 = vweird.f32 %v1894
        %vm1902 = vmor %vm1900, %vm1901
        %v1903 = vsel %vm1902, %v1894, %v1899
        %v1904 = vrsqrt.pop %v1873
        %v1905 = vmul.f32 %v1904, %v1873
        %v1906 = vmul.f32 %v1905, %v1904
        %v1907 = vmul.f32 0.5, %v1906
        %v1908 = vsub.f32 1.5, %v1907
        %v1909 = vmul.f32 %v1904, %v1908
        %vm1910 = vweird.f32 %v1873
        %vm1911 = vweird.f32 %v1904
        %vm1912 = vmor %vm1910, %vm1911
        %v1913 = vsel %vm1912, %v1904, %v1909
        %v1914 = vmul.f32 %v1846, %v1883
        %v1915 = vmul.f32 %v1847, %v1893
        %v1916 = vmul.f32 %v1848, %v1903
        %v1917 = vmul.f32 %v1849, %v1913
        %v1918 = vld [vmem:[%s15] sm:$0x1]
        %v1920 = vperm.slane %v1918, 0
        %v1922 = vmul.f32 %v1914, %v1920
        %v1923 = vmul.f32 %v1915, %v1920
        %v1924 = vmul.f32 %v1916, %v1920
        %v1925 = vmul.f32 %v1917, %v1920
        %v1926 = vld [vmem:[%s16] sm:$0x1]
        %v1928 = vperm.slane %v1926, 0
        %v1930 = vadd.f32 %v1922, %v1928
        %v1931 = vadd.f32 %v1923, %v1928
        %v1932 = vadd.f32 %v1924, %v1928
        %v1933 = vadd.f32 %v1925, %v1928
        %1934 = vst.msk [vmem:[%s544] sm:$0xff] %vm622, %v1930
        %1935 = vst.msk [vmem:[%s544 + $0x8] sm:$0xff] %vm622, %v1931
        %1936 = vst.msk [vmem:[%s544 + $0x10] sm:$0xff] %vm622, %v1932
        %1937 = vst.msk [vmem:[%s544 + $0x18] sm:$0xff] %vm622, %v1933
        %s1938 = sand.u32 %s401, 1
        %s1939 = scalar_lea.sflag [#allocation4], %s1938
        %s1940 = sand.u32 %s401, 1
        %s1941 = smul.addr %s1940, 32
        %s1942 = scalar_lea.vmem [#allocation3], %s1941
        // Predicated region
        $region89: #{tpu_custom_call.1} parent=87 // pred_check
          %p1943 = pneg %p411
        $region90: #{tpu_custom_call.1} parent=87 // pred_check_branch
          %1945 = sbr.rel (%p1943) target = $region92
        $region91: #{tpu_custom_call.1} parent=87 // pred_region
          %s1946 = smul.u32 2, %s31
          %1948 = vsyncadd %s1939, 0
          %s1949 = smul.addr %s1946, 2
          %s1950 = smul.addr %s1949, 8
          %s1951 = scalar_lea.hbm %s17, %s1950
          %s1952 = sshll.u32 %s1942, 4
          %s1953 = int_to_ptr.vmem [resolvable:$true] %s1952
          %s1954 = sshll.u32 %s1951, 4
          %s1955 = int_to_ptr.hbm [resolvable:$true] %s1954
          %1960 = dma.vmem_to_hbm [thread:$0]  %s1953, 512, %s1955, %s1939, 128, 128, 8
        $region92: #{tpu_custom_call.1} parent=87 // pred_fallthru
          _
      $region88: #{tpu_custom_call.1} parent=5 // pred_fallthru
        _
      %p1961 = scmp.le.s32.totalorder 2, %s26
      // Predicated region
      $region93: #{tpu_custom_call.1} parent=5 // pred_check
        %p1962 = pneg %p1961
      $region94: #{tpu_custom_call.1} parent=5 // pred_check_branch
        %1964 = sbr.rel (%p1962) target = $region96
      $region95: #{tpu_custom_call.1} parent=5 // pred_region
        %s1965 = ssub.s32 %s26, 2
        // Predicated region
        $region97: #{tpu_custom_call.1} parent=95 // pred_check
          %p1966 = pneg %p417
        $region98: #{tpu_custom_call.1} parent=95 // pred_check_branch
          %1968 = sbr.rel (%p1966) target = $region100
        $region99: #{tpu_custom_call.1} parent=95 // pred_region
          %s1969 = sand.u32 %s402, 1
          %s1970 = scalar_lea.sflag [#allocation4], %s1969
          %s1971 = sand.u32 %s402, 1
          %s1972 = smul.addr %s1971, 32
          %s1973 = scalar_lea.vmem [#allocation3], %s1972
          %1975 = dma.done %s1970, 512
        $region100: #{tpu_custom_call.1} parent=95 // pred_fallthru
          _
      $region96: #{tpu_custom_call.1} parent=5 // pred_fallthru
        _
    $region6: #{tpu_custom_call.1} parent=1 // loop_footer
      %s30 = sadd.s32 1, %s26
    $region7: #{tpu_custom_call.1} parent=1 // loop_footer_branch
      %25 = sbr.rel target = $region3
    $region8: #{tpu_custom_call.1} parent=1 // loop_exit
      _
    %1976 = vsyncpa [#allocation4], 1
    %s1977 = scalar_lea.sflag [#allocation4], 1
    %1978 = vsyncpa %s1977, 1

</llo_original>
